<compile_context>
chip_gen: v6e
topology: v6e:2x2x1
jax: 0.10.0
libtpu: 0.0.40
codegen_flags: <defaults>
</compile_context>

<pallas_src>
import functools

import jax
import jax.numpy as jnp
import numpy as np
from jax.experimental import pallas as pl
from jax.experimental.pallas import tpu as pltpu


def _layernorm(x, w, b, eps=1e-5):
    mu = jnp.mean(x, axis=-1, keepdims=True)
    var = jnp.mean((x - mu) ** 2, axis=-1, keepdims=True)
    return (x - mu) * jax.lax.rsqrt(var + eps) * w + b


def _gelu_exact(x):
    # nn.GELU default = exact (erf-based) GELU.
    return 0.5 * x * (1.0 + jax.lax.erf(x * (1.0 / jnp.sqrt(2.0))))


# ---------------------------------------------------------------------------
# Kernel 1: LayerNorm1 + QKV projection (token-tiled, fully parallel grid).
# q/v: (B, H, N, hd) (q pre-scaled); K stored transposed: (B, H, hd, N).
# ---------------------------------------------------------------------------
def ln_qkv_kernel(x_ref, ln1w_ref, ln1b_ref, wqkv_ref, q_ref, k_ref, v_ref,
                  *, num_heads, head_dim, scale):
    dim = num_heads * head_dim
    xn = _layernorm(x_ref[0], ln1w_ref[...], ln1b_ref[...])          # (tt, D) f32
    qkv = jnp.dot(xn.astype(wqkv_ref.dtype), wqkv_ref[...],
                  preferred_element_type=jnp.float32)                # (tt, 3D) f32
    # One XLU transpose of the whole K slab here saves a transpose on every kv
    # step of kernel 2 and makes the K stores lane-dense (tokens on lanes).
    k_t = jnp.transpose(qkv[:, dim:2 * dim])                         # (D, tt) f32
    for h in range(num_heads):                                       # static unroll
        base = h * head_dim
        q_ref[0, h] = (qkv[:, base:base + head_dim] * scale).astype(q_ref.dtype)
        k_ref[0, h] = k_t[base:base + head_dim, :].astype(k_ref.dtype)
        v_ref[0, h] = qkv[:, 2 * dim + base:2 * dim + base + head_dim].astype(v_ref.dtype)


# ---------------------------------------------------------------------------
# Kernel 2: flash attention (online softmax over kv tiles, heads batched in one
# dot_general, transposed-K layout) + output projection + residual + LN2 + MLP.
# ---------------------------------------------------------------------------
def attn_mlp_kernel(q_ref, k_ref, v_ref, x_ref,
                    wproj_ref, bproj_ref, ln2w_ref, ln2b_ref,
                    w1_ref, b1_ref, w2_ref, b2_ref,
                    o_ref, m_sc, l_sc, acc_sc,
                    *, num_heads, head_dim):
    ki = pl.program_id(2)

    @pl.when(ki == 0)
    def _():
        m_sc[...] = jnp.full_like(m_sc, -jnp.inf)
        l_sc[...] = jnp.zeros_like(l_sc)
        acc_sc[...] = jnp.zeros_like(acc_sc)

    qh = q_ref[0]                       # (H, tq, hd) bf16 (already scaled)
    kt = k_ref[0]                       # (H, hd, tk) bf16 (K stored transposed)
    vh = v_ref[0]                       # (H, tk, hd) bf16

    # All heads in a single batched MXU matmul; contraction is on the natural
    # dims (lhs last / rhs second-to-last) -> no per-step XLU transpose.
    s = jnp.einsum('hqd,hdk->hqk', qh, kt,
                   preferred_element_type=jnp.float32)               # (H, tq, tk)

    m_prev = m_sc[...]                                               # (H, tq, 1)
    m_new = jnp.maximum(m_prev, s.max(axis=-1, keepdims=True))
    alpha = jnp.exp(m_prev - m_new)
    # TODO(synk): on v6e/v7x the exp could use the bf16 EUP path (~2x); kept f32
    # for v5e compatibility and accuracy.
    p = jnp.exp(s - m_new)                                           # (H, tq, tk)
    # TODO(synk): p.sum could be folded into the PV matmul (ones column) if the
    # XLU ever becomes the binding slot after removing the K transpose.
    l_sc[...] = alpha * l_sc[...] + p.sum(axis=-1, keepdims=True)
    acc_sc[...] = alpha * acc_sc[...] + jnp.einsum(
        'hqk,hkd->hqd', p.astype(vh.dtype), vh,
        preferred_element_type=jnp.float32)                          # (H, tq, hd)
    m_sc[...] = m_new
    # TODO(synk): attention Dropout(0.1) is identity in eval mode; not applied.

    @pl.when(ki == pl.num_programs(2) - 1)
    def _():
        inv_l = pl.reciprocal(l_sc[...], approx=False)               # exact recip
        scaled = acc_sc[...] * inv_l                                 # (H, tq, hd) f32
        # Output projection: contract each head directly against its slice of
        # wproj (no (tq, D) reassembly scratch / masked stores), fused with the
        # residual add and the projection bias.
        proj = x_ref[0] + bproj_ref[...]                             # (tq, D) f32
        for h in range(num_heads):                                   # static unroll
            proj = proj + jnp.dot(
                scaled[h].astype(wproj_ref.dtype),
                wproj_ref[h * head_dim:(h + 1) * head_dim, :],
                preferred_element_type=jnp.float32)
        xn2 = _layernorm(proj, ln2w_ref[...], ln2b_ref[...])
        h1 = jnp.dot(xn2.astype(w1_ref.dtype), w1_ref[...],
                     preferred_element_type=jnp.float32) + b1_ref[...]
        h1 = _gelu_exact(h1)
        out = jnp.dot(h1.astype(w2_ref.dtype), w2_ref[...],
                      preferred_element_type=jnp.float32) + b2_ref[...]
        o_ref[0] = out.astype(o_ref.dtype)


# ---------------------------------------------------------------------------
# Wrapper helpers.
# ---------------------------------------------------------------------------
def _vmem_limit(estimate_bytes):
    """Generation-aware VMEM limit: never below the estimate, capped below the
    physical per-core VMEM (v5e/v6e: 128 MiB -> ~112 MiB, v7x: 64 MiB -> ~56 MiB)."""
    cap = 64 * 1024 * 1024                      # conservative fallback (v7x)
    try:
        info = pltpu.get_tpu_info()
        cap = int(getattr(info, "vmem_capacity_bytes", cap) or cap)
    except Exception:
        pass
    ceiling = (cap * 7) // 8                    # headroom for Mosaic internal scratch
    return int(min(ceiling, max(32 * 1024 * 1024, estimate_bytes)))


def _const_spec(shape):
    """Block whose index never changes across the grid: single VMEM buffer."""
    return pl.BlockSpec(shape, lambda *args: (0,) * len(shape),
                        pipeline_mode=pl.Buffered(1))


def _pick_tile(n, target):
    """Largest divisor of n that is a multiple of 128 and <= target, else n."""
    if n <= target:
        return n
    t = (target // 128) * 128
    while t >= 128:
        if n % t == 0:
            return t
        t -= 128
    return n


def prepare_params(params):
    """Cast the big matmul weights to bf16 once (cache and reuse across calls)."""
    p = dict(params)
    for name in ("wqkv", "wproj", "w1", "w2"):
        p[name] = p[name].astype(jnp.bfloat16)
    return p


def transformer_block(x, params, *, num_heads, tt=None, tq=None, tk=None,
                      out_dtype=jnp.float32):
    B, H, W, D = x.shape
    N = H * W
    assert D % num_heads == 0
    head_dim = D // num_heads
    hidden = params["w1"].shape[1]
    scale = head_dim ** -0.5

    tt = _pick_tile(N, tt if tt is not None else 256)
    tq = _pick_tile(N, tq if tq is not None else 256)
    # tk bounded to keep the live (H, tq, tk) softmax tiles small; when the whole
    # sequence is short, tk = N gives a single kv step so K/V are fetched once
    # per batch (their block index then only depends on the batch axis).
    tk = _pick_tile(N, tk if tk is not None else (N if N <= 256 else 256))
    assert N % tt == 0 and N % tq == 0 and N % tk == 0

    xf = x.reshape(B, N, D).astype(jnp.float32)

    def _bf16(w):
        return w if w.dtype == jnp.bfloat16 else w.astype(jnp.bfloat16)

    wqkv, wproj = _bf16(params["wqkv"]), _bf16(params["wproj"])
    w1, w2 = _bf16(params["w1"]), _bf16(params["w2"])

    F32, BF16 = 4, 2

    # ---- kernel 1: LN1 + QKV projection ----
    est1 = int(1.25 * (
        2 * tt * D * F32                      # x tile (double-buffered)
        + 2 * 3 * tt * D * BF16               # q / k^T / v output tiles (double-buffered)
        + 3 * D * D * BF16                    # wqkv (single-buffered)
        + 4 * D * F32                         # LN1 weight/bias
        + 6 * tt * D * F32))                  # in-kernel xn / qkv / k^T temporaries
    qv_shape = jax.ShapeDtypeStruct((B, num_heads, N, head_dim), jnp.bfloat16)
    kT_shape = jax.ShapeDtypeStruct((B, num_heads, head_dim, N), jnp.bfloat16)
    q, k, v = pl.pallas_call(
        functools.partial(ln_qkv_kernel, num_heads=num_heads,
                          head_dim=head_dim, scale=scale),
        out_shape=(qv_shape, kT_shape, qv_shape),
        grid_spec=pltpu.PrefetchScalarGridSpec(
            num_scalar_prefetch=0,
            grid=(B, N // tt),
            in_specs=[
                pl.BlockSpec((1, tt, D), lambda b, t: (b, t, 0)),
                _const_spec((1, D)),                                  # ln1w
                _const_spec((1, D)),                                  # ln1b
                _const_spec((D, 3 * D)),                              # wqkv
            ],
            out_specs=(
                pl.BlockSpec((1, num_heads, tt, head_dim), lambda b, t: (b, 0, t, 0)),
                pl.BlockSpec((1, num_heads, head_dim, tt), lambda b, t: (b, 0, 0, t)),
                pl.BlockSpec((1, num_heads, tt, head_dim), lambda b, t: (b, 0, t, 0)),
            ),
        ),
        compiler_params=pltpu.CompilerParams(
            dimension_semantics=("parallel", "parallel"),
            vmem_limit_bytes=_vmem_limit(est1),
        ),
    )(xf, params["ln1w"], params["ln1b"], wqkv)

    # ---- kernel 2: flash attention + proj + residual + LN2 + MLP ----
    est2 = int(1.25 * (
        2 * tq * D * BF16                     # q tile (double-buffered)
        + 2 * 2 * tk * D * BF16               # k^T + v tiles (double-buffered)
        + 2 * tq * D * F32                    # x (residual) tile
        + 2 * tq * D * F32                    # output tile
        + (D * D + 2 * D * hidden) * BF16     # wproj / w1 / w2 (single-buffered)
        + (4 * D + hidden) * F32              # LN2 + biases
        + num_heads * tq * (head_dim + 2) * F32   # m / l / acc scratch
        + 3 * num_heads * tq * tk * F32       # s, p and exp temporaries
        + (tq * hidden + 2 * tq * D) * F32))  # MLP hidden + epilogue temporaries
    out = pl.pallas_call(
        functools.partial(attn_mlp_kernel, num_heads=num_heads, head_dim=head_dim),
        out_shape=jax.ShapeDtypeStruct((B, N, D), out_dtype),
        grid_spec=pltpu.PrefetchScalarGridSpec(
            num_scalar_prefetch=0,
            grid=(B, N // tq, N // tk),
            in_specs=[
                pl.BlockSpec((1, num_heads, tq, head_dim), lambda b, qi, ki: (b, 0, qi, 0)),  # q
                pl.BlockSpec((1, num_heads, head_dim, tk), lambda b, qi, ki: (b, 0, 0, ki)),  # k^T
                pl.BlockSpec((1, num_heads, tk, head_dim), lambda b, qi, ki: (b, 0, ki, 0)),  # v
                pl.BlockSpec((1, tq, D), lambda b, qi, ki: (b, qi, 0)),                        # x
                _const_spec((D, D)),         # wproj
                _const_spec((1, D)),         # bproj
                _const_spec((1, D)),         # ln2w
                _const_spec((1, D)),         # ln2b
                _const_spec((D, hidden)),    # w1
                _const_spec((1, hidden)),    # b1
                _const_spec((hidden, D)),    # w2
                _const_spec((1, D)),         # b2
            ],
            out_specs=pl.BlockSpec((1, tq, D), lambda b, qi, ki: (b, qi, 0)),
            scratch_shapes=[
                pltpu.VMEM((num_heads, tq, 1), jnp.float32),          # running max
                pltpu.VMEM((num_heads, tq, 1), jnp.float32),          # running sum
                pltpu.VMEM((num_heads, tq, head_dim), jnp.float32),   # output accumulator
            ],
        ),
        compiler_params=pltpu.CompilerParams(
            dimension_semantics=("parallel", "parallel", "arbitrary"),
            vmem_limit_bytes=_vmem_limit(est2),
        ),
    )(q, k, v, xf, wproj, params["bproj"], params["ln2w"], params["ln2b"],
      w1, params["b1"], w2, params["b2"])
    return out.reshape(B, H, W, D)


# ---------------------------------------------------------------------------
# Pure-JAX reference (mirror of the PyTorch forward) and a small demo.
# ---------------------------------------------------------------------------
def reference_block(x, p, *, num_heads):
    B, H, W, D = x.shape
    N = H * W
    hd = D // num_heads
    xf = x.reshape(B, N, D)
    xn = _layernorm(xf, p["ln1w"][0], p["ln1b"][0])
    qkv = xn @ p["wqkv"]                                             # (B, N, 3D)
    qkv = qkv.reshape(B, N, 3, num_heads, hd).transpose(2, 0, 3, 1, 4)
    qkv = qkv.reshape(3, B * num_heads, N, hd)
    q, k, v = qkv[0], qkv[1], qkv[2]
    wei = jax.nn.softmax((q * hd ** -0.5) @ jnp.swapaxes(k, -2, -1), axis=-1)
    out = wei @ v                                                    # (B*nh, N, hd)
    out = out.reshape(B, num_heads, N, hd).transpose(0, 2, 1, 3).reshape(B, N, D)
    proj = out @ p["wproj"] + p["bproj"][0]
    x2 = proj + xf
    xn2 = _layernorm(x2, p["ln2w"][0], p["ln2b"][0])
    h1 = _gelu_exact(xn2 @ p["w1"] + p["b1"][0])
    return (h1 @ p["w2"] + p["b2"][0]).reshape(B, H, W, D)


def init_params(key, dim, num_heads, mlp_ratio=4.0):
    hidden = int(dim * mlp_ratio)
    ks = jax.random.split(key, 8)
    s = 0.02
    return {
        "ln1w": jnp.ones((1, dim), jnp.float32),
        "ln1b": jnp.zeros((1, dim), jnp.float32),
        "wqkv": s * jax.random.normal(ks[0], (dim, 3 * dim), jnp.float32),
        "wproj": s * jax.random.normal(ks[1], (dim, dim), jnp.float32),
        "bproj": s * jax.random.normal(ks[2], (1, dim), jnp.float32),
        "ln2w": jnp.ones((1, dim), jnp.float32),
        "ln2b": jnp.zeros((1, dim), jnp.float32),
        "w1": s * jax.random.normal(ks[3], (dim, hidden), jnp.float32),
        "b1": s * jax.random.normal(ks[4], (1, hidden), jnp.float32),
        "w2": s * jax.random.normal(ks[5], (hidden, dim), jnp.float32),
        "b2": s * jax.random.normal(ks[6], (1, dim), jnp.float32),
    }


if __name__ == "__main__":
    B, H, W, dim = 2, 16, 16, 128       # N = 256 tokens, lane-dense channel dim
    num_heads = 4

    key = jax.random.PRNGKey(0)
    kx, kp = jax.random.split(key)
    x = jax.random.normal(kx, (B, H, W, dim), jnp.float32)
    params = init_params(kp, dim, num_heads)
    bf16_params = prepare_params(params)   # hoisted one-time bf16 weight casts

    # 128-wide tiles keep every block lane-dense and exercise the multi-token-tile,
    # multi-q-tile and multi-kv-step (online softmax) paths; production defaults
    # are tq=256 / tk<=256 / tt=256 chosen automatically.
    out = transformer_block(x, bf16_params, num_heads=num_heads, tt=128, tq=128, tk=128)
    out = jax.block_until_ready(out)

    with jax.default_matmul_precision("float32"):
        ref = jax.block_until_ready(reference_block(x, params, num_heads=num_heads))

    assert out.shape == (B, H, W, dim)
    np.testing.assert_allclose(np.asarray(out), np.asarray(ref), rtol=2e-2, atol=5e-3)
    print("KERNEL_OK")
</pallas_src>

<mosaic_0001>
module attributes {stable_mosaic.version = 11 : i64} {
  func.func @ln_qkv_kernel(%arg0: i32, %arg1: i32, %arg2: memref<1x128x128xf32, #tpu.memory_space<vmem>>, %arg3: memref<1x128xf32, #tpu.memory_space<vmem>>, %arg4: memref<1x128xf32, #tpu.memory_space<vmem>>, %arg5: memref<128x384xbf16, #tpu.memory_space<vmem>>, %arg6: memref<1x4x128x32xbf16, #tpu.memory_space<vmem>>, %arg7: memref<1x4x32x128xbf16, #tpu.memory_space<vmem>>, %arg8: memref<1x4x128x32xbf16, #tpu.memory_space<vmem>>) attributes {dimension_semantics = [#tpu.dimension_semantics<parallel>, #tpu.dimension_semantics<parallel>], iteration_bounds = array<i64: 2, 2>, scalar_prefetch = 0 : i64, scratch_operands = 0 : i64, tpu.core_type = #tpu.core_type<tc>, window_params = [{transform_indices = @transform_0, window_bounds = array<i64: 1, 128, 128>}, {pipeline_mode = #tpu.pipeline_mode<synchronous>, transform_indices = @transform_1, window_bounds = array<i64: 1, 128>}, {pipeline_mode = #tpu.pipeline_mode<synchronous>, transform_indices = @transform_2, window_bounds = array<i64: 1, 128>}, {pipeline_mode = #tpu.pipeline_mode<synchronous>, transform_indices = @transform_3, window_bounds = array<i64: 128, 384>}, {transform_indices = @transform_4, window_bounds = array<i64: 1, 4, 128, 32>}, {transform_indices = @transform_5, window_bounds = array<i64: 1, 4, 32, 128>}, {transform_indices = @transform_6, window_bounds = array<i64: 1, 4, 128, 32>}]} {
    %c0 = arith.constant 0 : index
    %c0_0 = arith.constant 0 : index
    %c0_1 = arith.constant 0 : index
    %0 = vector.load %arg2[%c0, %c0_0, %c0_1] : memref<1x128x128xf32, #tpu.memory_space<vmem>>, vector<1x128x128xf32>
    %1 = vector.shape_cast %0 : vector<1x128x128xf32> to vector<128x128xf32>
    %c0_2 = arith.constant 0 : index
    %c0_3 = arith.constant 0 : index
    %2 = vector.load %arg3[%c0_2, %c0_3] : memref<1x128xf32, #tpu.memory_space<vmem>>, vector<1x128xf32>
    %c0_4 = arith.constant 0 : index
    %c0_5 = arith.constant 0 : index
    %3 = vector.load %arg4[%c0_4, %c0_5] : memref<1x128xf32, #tpu.memory_space<vmem>>, vector<1x128xf32>
    %cst = arith.constant dense<0.000000e+00> : vector<128xf32>
    %4 = vector.multi_reduction <add>, %1, %cst [1] : vector<128x128xf32> to vector<128xf32>
    %5 = vector.shape_cast %4 : vector<128xf32> to vector<128x1xf32>
    %cst_6 = arith.constant 1.280000e+02 : f32
    %6 = vector.broadcast %cst_6 : f32 to vector<128x1xf32>
    %7 = arith.divf %5, %6 : vector<128x1xf32>
    %8 = vector.broadcast %7 : vector<128x1xf32> to vector<128x128xf32>
    %9 = arith.subf %1, %8 : vector<128x128xf32>
    %10 = arith.mulf %9, %9 : vector<128x128xf32>
    %cst_7 = arith.constant dense<0.000000e+00> : vector<128xf32>
    %11 = vector.multi_reduction <add>, %10, %cst_7 [1] : vector<128x128xf32> to vector<128xf32>
    %12 = vector.shape_cast %11 : vector<128xf32> to vector<128x1xf32>
    %cst_8 = arith.constant 1.280000e+02 : f32
    %13 = vector.broadcast %cst_8 : f32 to vector<128x1xf32>
    %14 = arith.divf %12, %13 : vector<128x1xf32>
    %15 = vector.broadcast %7 : vector<128x1xf32> to vector<128x128xf32>
    %16 = arith.subf %1, %15 : vector<128x128xf32>
    %cst_9 = arith.constant 9.99999974E-6 : f32
    %17 = vector.broadcast %cst_9 : f32 to vector<128x1xf32>
    %18 = arith.addf %14, %17 : vector<128x1xf32>
    %19 = math.rsqrt %18 : vector<128x1xf32>
    %20 = vector.broadcast %19 : vector<128x1xf32> to vector<128x128xf32>
    %21 = arith.mulf %16, %20 : vector<128x128xf32>
    %22 = vector.broadcast %2 : vector<1x128xf32> to vector<128x128xf32>
    %23 = arith.mulf %21, %22 : vector<128x128xf32>
    %24 = vector.broadcast %3 : vector<1x128xf32> to vector<128x128xf32>
    %25 = arith.addf %23, %24 : vector<128x128xf32>
    %26 = arith.truncf %25 : vector<128x128xf32> to vector<128x128xbf16>
    %c0_10 = arith.constant 0 : index
    %c0_11 = arith.constant 0 : index
    %27 = vector.load %arg5[%c0_10, %c0_11] : memref<128x384xbf16, #tpu.memory_space<vmem>>, vector<128x384xbf16>
    %cst_12 = arith.constant dense<0.000000e+00> : vector<128x384xf32>
    %28 = tpu.matmul %26, %27, %cst_12 {dimension_numbers = #tpu.dot_dimension_numbers<[1], [0], [0], [1], [0, 0, 1, 1], [], []>} : vector<128x128xbf16>, vector<128x384xbf16>, vector<128x384xf32> -> vector<128x384xf32>
    %29 = vector.extract_strided_slice %28 {offsets = [0, 128], sizes = [128, 128], strides = [1, 1]} : vector<128x384xf32> to vector<128x128xf32>
    %30 = tpu.transpose %29, [1, 0] : vector<128x128xf32> -> vector<128x128xf32>
    %31 = vector.extract_strided_slice %28 {offsets = [0, 0], sizes = [128, 32], strides = [1, 1]} : vector<128x384xf32> to vector<128x32xf32>
    %cst_13 = arith.constant 0.176776692 : f32
    %32 = vector.broadcast %cst_13 : f32 to vector<128x32xf32>
    %33 = arith.mulf %31, %32 : vector<128x32xf32>
    %34 = arith.truncf %33 : vector<128x32xf32> to vector<128x32xbf16>
    %c0_14 = arith.constant 0 : index
    %c0_15 = arith.constant 0 : index
    %c0_16 = arith.constant 0 : index
    %c0_17 = arith.constant 0 : index
    %35 = vector.load %arg6[%c0_14, %c0_15, %c0_16, %c0_17] : memref<1x4x128x32xbf16, #tpu.memory_space<vmem>>, vector<1x1x128x32xbf16>
    %36 = vector.shape_cast %35 : vector<1x1x128x32xbf16> to vector<128x32xbf16>
    %37 = vector.shape_cast %34 : vector<128x32xbf16> to vector<1x1x128x32xbf16>
    tpu.vector_store %arg6[%c0_14, %c0_15, %c0_16, %c0_17], %37 {strides = array<i32>} : memref<1x4x128x32xbf16, #tpu.memory_space<vmem>>, vector<1x1x128x32xbf16>,
    %38 = vector.extract_strided_slice %30 {offsets = [0, 0], sizes = [32, 128], strides = [1, 1]} : vector<128x128xf32> to vector<32x128xf32>
    %39 = arith.truncf %38 : vector<32x128xf32> to vector<32x128xbf16>
    %c0_18 = arith.constant 0 : index
    %c0_19 = arith.constant 0 : index
    %c0_20 = arith.constant 0 : index
    %c0_21 = arith.constant 0 : index
    %40 = vector.load %arg7[%c0_18, %c0_19, %c0_20, %c0_21] : memref<1x4x32x128xbf16, #tpu.memory_space<vmem>>, vector<1x1x32x128xbf16>
    %41 = vector.shape_cast %40 : vector<1x1x32x128xbf16> to vector<32x128xbf16>
    %42 = vector.shape_cast %39 : vector<32x128xbf16> to vector<1x1x32x128xbf16>
    tpu.vector_store %arg7[%c0_18, %c0_19, %c0_20, %c0_21], %42 {strides = array<i32>} : memref<1x4x32x128xbf16, #tpu.memory_space<vmem>>, vector<1x1x32x128xbf16>,
    %43 = vector.extract_strided_slice %28 {offsets = [0, 256], sizes = [128, 32], strides = [1, 1]} : vector<128x384xf32> to vector<128x32xf32>
    %44 = arith.truncf %43 : vector<128x32xf32> to vector<128x32xbf16>
    %c0_22 = arith.constant 0 : index
    %c0_23 = arith.constant 0 : index
    %c0_24 = arith.constant 0 : index
    %c0_25 = arith.constant 0 : index
    %45 = vector.load %arg8[%c0_22, %c0_23, %c0_24, %c0_25] : memref<1x4x128x32xbf16, #tpu.memory_space<vmem>>, vector<1x1x128x32xbf16>
    %46 = vector.shape_cast %45 : vector<1x1x128x32xbf16> to vector<128x32xbf16>
    %47 = vector.shape_cast %44 : vector<128x32xbf16> to vector<1x1x128x32xbf16>
    tpu.vector_store %arg8[%c0_22, %c0_23, %c0_24, %c0_25], %47 {strides = array<i32>} : memref<1x4x128x32xbf16, #tpu.memory_space<vmem>>, vector<1x1x128x32xbf16>,
    %48 = vector.extract_strided_slice %28 {offsets = [0, 32], sizes = [128, 32], strides = [1, 1]} : vector<128x384xf32> to vector<128x32xf32>
    %cst_26 = arith.constant 0.176776692 : f32
    %49 = vector.broadcast %cst_26 : f32 to vector<128x32xf32>
    %50 = arith.mulf %48, %49 : vector<128x32xf32>
    %51 = arith.truncf %50 : vector<128x32xf32> to vector<128x32xbf16>
    %c0_27 = arith.constant 0 : index
    %c1 = arith.constant 1 : index
    %c0_28 = arith.constant 0 : index
    %c0_29 = arith.constant 0 : index
    %52 = vector.load %arg6[%c0_27, %c1, %c0_28, %c0_29] : memref<1x4x128x32xbf16, #tpu.memory_space<vmem>>, vector<1x1x128x32xbf16>
    %53 = vector.shape_cast %52 : vector<1x1x128x32xbf16> to vector<128x32xbf16>
    %54 = vector.shape_cast %51 : vector<128x32xbf16> to vector<1x1x128x32xbf16>
    tpu.vector_store %arg6[%c0_27, %c1, %c0_28, %c0_29], %54 {strides = array<i32>} : memref<1x4x128x32xbf16, #tpu.memory_space<vmem>>, vector<1x1x128x32xbf16>,
    %55 = vector.extract_strided_slice %30 {offsets = [32, 0], sizes = [32, 128], strides = [1, 1]} : vector<128x128xf32> to vector<32x128xf32>
    %56 = arith.truncf %55 : vector<32x128xf32> to vector<32x128xbf16>
    %c0_30 = arith.constant 0 : index
    %c1_31 = arith.constant 1 : index
    %c0_32 = arith.constant 0 : index
    %c0_33 = arith.constant 0 : index
    %57 = vector.load %arg7[%c0_30, %c1_31, %c0_32, %c0_33] : memref<1x4x32x128xbf16, #tpu.memory_space<vmem>>, vector<1x1x32x128xbf16>
    %58 = vector.shape_cast %57 : vector<1x1x32x128xbf16> to vector<32x128xbf16>
    %59 = vector.shape_cast %56 : vector<32x128xbf16> to vector<1x1x32x128xbf16>
    tpu.vector_store %arg7[%c0_30, %c1_31, %c0_32, %c0_33], %59 {strides = array<i32>} : memref<1x4x32x128xbf16, #tpu.memory_space<vmem>>, vector<1x1x32x128xbf16>,
    %60 = vector.extract_strided_slice %28 {offsets = [0, 288], sizes = [128, 32], strides = [1, 1]} : vector<128x384xf32> to vector<128x32xf32>
    %61 = arith.truncf %60 : vector<128x32xf32> to vector<128x32xbf16>
    %c0_34 = arith.constant 0 : index
    %c1_35 = arith.constant 1 : index
    %c0_36 = arith.constant 0 : index
    %c0_37 = arith.constant 0 : index
    %62 = vector.load %arg8[%c0_34, %c1_35, %c0_36, %c0_37] : memref<1x4x128x32xbf16, #tpu.memory_space<vmem>>, vector<1x1x128x32xbf16>
    %63 = vector.shape_cast %62 : vector<1x1x128x32xbf16> to vector<128x32xbf16>
    %64 = vector.shape_cast %61 : vector<128x32xbf16> to vector<1x1x128x32xbf16>
    tpu.vector_store %arg8[%c0_34, %c1_35, %c0_36, %c0_37], %64 {strides = array<i32>} : memref<1x4x128x32xbf16, #tpu.memory_space<vmem>>, vector<1x1x128x32xbf16>,
    %65 = vector.extract_strided_slice %28 {offsets = [0, 64], sizes = [128, 32], strides = [1, 1]} : vector<128x384xf32> to vector<128x32xf32>
    %cst_38 = arith.constant 0.176776692 : f32
    %66 = vector.broadcast %cst_38 : f32 to vector<128x32xf32>
    %67 = arith.mulf %65, %66 : vector<128x32xf32>
    %68 = arith.truncf %67 : vector<128x32xf32> to vector<128x32xbf16>
    %c0_39 = arith.constant 0 : index
    %c2 = arith.constant 2 : index
    %c0_40 = arith.constant 0 : index
    %c0_41 = arith.constant 0 : index
    %69 = vector.load %arg6[%c0_39, %c2, %c0_40, %c0_41] : memref<1x4x128x32xbf16, #tpu.memory_space<vmem>>, vector<1x1x128x32xbf16>
    %70 = vector.shape_cast %69 : vector<1x1x128x32xbf16> to vector<128x32xbf16>
    %71 = vector.shape_cast %68 : vector<128x32xbf16> to vector<1x1x128x32xbf16>
    tpu.vector_store %arg6[%c0_39, %c2, %c0_40, %c0_41], %71 {strides = array<i32>} : memref<1x4x128x32xbf16, #tpu.memory_space<vmem>>, vector<1x1x128x32xbf16>,
    %72 = vector.extract_strided_slice %30 {offsets = [64, 0], sizes = [32, 128], strides = [1, 1]} : vector<128x128xf32> to vector<32x128xf32>
    %73 = arith.truncf %72 : vector<32x128xf32> to vector<32x128xbf16>
    %c0_42 = arith.constant 0 : index
    %c2_43 = arith.constant 2 : index
    %c0_44 = arith.constant 0 : index
    %c0_45 = arith.constant 0 : index
    %74 = vector.load %arg7[%c0_42, %c2_43, %c0_44, %c0_45] : memref<1x4x32x128xbf16, #tpu.memory_space<vmem>>, vector<1x1x32x128xbf16>
    %75 = vector.shape_cast %74 : vector<1x1x32x128xbf16> to vector<32x128xbf16>
    %76 = vector.shape_cast %73 : vector<32x128xbf16> to vector<1x1x32x128xbf16>
    tpu.vector_store %arg7[%c0_42, %c2_43, %c0_44, %c0_45], %76 {strides = array<i32>} : memref<1x4x32x128xbf16, #tpu.memory_space<vmem>>, vector<1x1x32x128xbf16>,
    %77 = vector.extract_strided_slice %28 {offsets = [0, 320], sizes = [128, 32], strides = [1, 1]} : vector<128x384xf32> to vector<128x32xf32>
    %78 = arith.truncf %77 : vector<128x32xf32> to vector<128x32xbf16>
    %c0_46 = arith.constant 0 : index
    %c2_47 = arith.constant 2 : index
    %c0_48 = arith.constant 0 : index
    %c0_49 = arith.constant 0 : index
    %79 = vector.load %arg8[%c0_46, %c2_47, %c0_48, %c0_49] : memref<1x4x128x32xbf16, #tpu.memory_space<vmem>>, vector<1x1x128x32xbf16>
    %80 = vector.shape_cast %79 : vector<1x1x128x32xbf16> to vector<128x32xbf16>
    %81 = vector.shape_cast %78 : vector<128x32xbf16> to vector<1x1x128x32xbf16>
    tpu.vector_store %arg8[%c0_46, %c2_47, %c0_48, %c0_49], %81 {strides = array<i32>} : memref<1x4x128x32xbf16, #tpu.memory_space<vmem>>, vector<1x1x128x32xbf16>,
    %82 = vector.extract_strided_slice %28 {offsets = [0, 96], sizes = [128, 32], strides = [1, 1]} : vector<128x384xf32> to vector<128x32xf32>
    %cst_50 = arith.constant 0.176776692 : f32
    %83 = vector.broadcast %cst_50 : f32 to vector<128x32xf32>
    %84 = arith.mulf %82, %83 : vector<128x32xf32>
    %85 = arith.truncf %84 : vector<128x32xf32> to vector<128x32xbf16>
    %c0_51 = arith.constant 0 : index
    %c3 = arith.constant 3 : index
    %c0_52 = arith.constant 0 : index
    %c0_53 = arith.constant 0 : index
    %86 = vector.load %arg6[%c0_51, %c3, %c0_52, %c0_53] : memref<1x4x128x32xbf16, #tpu.memory_space<vmem>>, vector<1x1x128x32xbf16>
    %87 = vector.shape_cast %86 : vector<1x1x128x32xbf16> to vector<128x32xbf16>
    %88 = vector.shape_cast %85 : vector<128x32xbf16> to vector<1x1x128x32xbf16>
    tpu.vector_store %arg6[%c0_51, %c3, %c0_52, %c0_53], %88 {strides = array<i32>} : memref<1x4x128x32xbf16, #tpu.memory_space<vmem>>, vector<1x1x128x32xbf16>,
    %89 = vector.extract_strided_slice %30 {offsets = [96, 0], sizes = [32, 128], strides = [1, 1]} : vector<128x128xf32> to vector<32x128xf32>
    %90 = arith.truncf %89 : vector<32x128xf32> to vector<32x128xbf16>
    %c0_54 = arith.constant 0 : index
    %c3_55 = arith.constant 3 : index
    %c0_56 = arith.constant 0 : index
    %c0_57 = arith.constant 0 : index
    %91 = vector.load %arg7[%c0_54, %c3_55, %c0_56, %c0_57] : memref<1x4x32x128xbf16, #tpu.memory_space<vmem>>, vector<1x1x32x128xbf16>
    %92 = vector.shape_cast %91 : vector<1x1x32x128xbf16> to vector<32x128xbf16>
    %93 = vector.shape_cast %90 : vector<32x128xbf16> to vector<1x1x32x128xbf16>
    tpu.vector_store %arg7[%c0_54, %c3_55, %c0_56, %c0_57], %93 {strides = array<i32>} : memref<1x4x32x128xbf16, #tpu.memory_space<vmem>>, vector<1x1x32x128xbf16>,
    %94 = vector.extract_strided_slice %28 {offsets = [0, 352], sizes = [128, 32], strides = [1, 1]} : vector<128x384xf32> to vector<128x32xf32>
    %95 = arith.truncf %94 : vector<128x32xf32> to vector<128x32xbf16>
    %c0_58 = arith.constant 0 : index
    %c3_59 = arith.constant 3 : index
    %c0_60 = arith.constant 0 : index
    %c0_61 = arith.constant 0 : index
    %96 = vector.load %arg8[%c0_58, %c3_59, %c0_60, %c0_61] : memref<1x4x128x32xbf16, #tpu.memory_space<vmem>>, vector<1x1x128x32xbf16>
    %97 = vector.shape_cast %96 : vector<1x1x128x32xbf16> to vector<128x32xbf16>
    %98 = vector.shape_cast %95 : vector<128x32xbf16> to vector<1x1x128x32xbf16>
    tpu.vector_store %arg8[%c0_58, %c3_59, %c0_60, %c0_61], %98 {strides = array<i32>} : memref<1x4x128x32xbf16, #tpu.memory_space<vmem>>, vector<1x1x128x32xbf16>,
    return
  }
  func.func @transform_0(%arg0: i32, %arg1: i32) -> (i32, i32, i32) {
    %c0_i32 = arith.constant 0 : i32
    %c0_i32_0 = arith.constant 0 : i32
    return %arg0, %arg1, %c0_i32 : i32, i32, i32
  }
  func.func @transform_1(%arg0: i32, %arg1: i32) -> (i32, i32) {
    %c0_i32 = arith.constant 0 : i32
    %c0_i32_0 = arith.constant 0 : i32
    %c0_i32_1 = arith.constant 0 : i32
    return %c0_i32, %c0_i32_0 : i32, i32
  }
  func.func @transform_2(%arg0: i32, %arg1: i32) -> (i32, i32) {
    %c0_i32 = arith.constant 0 : i32
    %c0_i32_0 = arith.constant 0 : i32
    %c0_i32_1 = arith.constant 0 : i32
    return %c0_i32, %c0_i32_0 : i32, i32
  }
  func.func @transform_3(%arg0: i32, %arg1: i32) -> (i32, i32) {
    %c0_i32 = arith.constant 0 : i32
    %c0_i32_0 = arith.constant 0 : i32
    %c0_i32_1 = arith.constant 0 : i32
    return %c0_i32, %c0_i32_0 : i32, i32
  }
  func.func @transform_4(%arg0: i32, %arg1: i32) -> (i32, i32, i32, i32) {
    %c0_i32 = arith.constant 0 : i32
    %c0_i32_0 = arith.constant 0 : i32
    %c0_i32_1 = arith.constant 0 : i32
    return %arg0, %c0_i32, %arg1, %c0_i32_0 : i32, i32, i32, i32
  }
  func.func @transform_5(%arg0: i32, %arg1: i32) -> (i32, i32, i32, i32) {
    %c0_i32 = arith.constant 0 : i32
    %c0_i32_0 = arith.constant 0 : i32
    %c0_i32_1 = arith.constant 0 : i32
    return %arg0, %c0_i32, %c0_i32_0, %arg1 : i32, i32, i32, i32
  }
  func.func @transform_6(%arg0: i32, %arg1: i32) -> (i32, i32, i32, i32) {
    %c0_i32 = arith.constant 0 : i32
    %c0_i32_0 = arith.constant 0 : i32
    %c0_i32_1 = arith.constant 0 : i32
    return %arg0, %c0_i32, %arg1, %c0_i32_0 : i32, i32, i32, i32
  }
}

</mosaic_0001>

<llo_original>
// kernel: tpu_custom_call.1
$region0: #{tpu_custom_call.1}
  #allocation0 [shape = 'u32[]', space=smem, size = 0x4, offset = 0x4, fixed_abs, tag = 'smem constant byte address 0x4 - core index']
  #allocation1 [shape = 'u32[144,128]{1,0:T(1,128)}', space=vmem, size = 0x12000, scoped, tag = 'internal scratch']
  %s0 = inlined_call_operand.hbm [shape: f32[2,256,128], index: 0, kind: input, shape index: {}]
  %s1 = inlined_call_operand.vmem [shape: f32[1,128], index: 1, kind: input, shape index: {}]
  %s2 = inlined_call_operand.vmem [shape: f32[1,128], index: 2, kind: input, shape index: {}]
  %s3 = inlined_call_operand.hbm [shape: bf16[128,384], index: 3, kind: input, shape index: {}]
  %s4 = inlined_call_operand.vmem [shape: bf16[2,4,256,32], index: 4, kind: output, shape index: {0}]
  %s5 = inlined_call_operand.hbm [shape: bf16[2,4,32,256], index: 5, kind: output, shape index: {1}]
  %s6 = inlined_call_operand.vmem [shape: bf16[2,4,256,32], index: 6, kind: output, shape index: {2}]
  %7 = xla_tuple %s4, %s5, %s6
  %s8 = sld [smem:[#allocation0]]
  $region147: #{tpu_custom_call.1} parent=0
    _
  %s10 = ssub.s32 1, %s8
  %s11 = scalar_select 0, %s10, %s8
  $region1: #{tpu_custom_call.1} parent=0
    #allocation2 [shape = 'u8[131072]{0}', space=vmem, size = 0x20000, scoped, tag = 'input window, operand 0']
    #allocation3 [shape = 's32[2]{0}', space=sflag, size = 0x8, scoped, tag = 'scoped memory for tpu_custom_call.1']
    #allocation4 [shape = 's32[2]{0}', space=sflag, size = 0x8, scoped, tag = 'scoped memory for tpu_custom_call.1']
    #allocation5 [shape = 'u8[98304]{0}', space=vmem, size = 0x18000, scoped, tag = 'input window, operand 3, single buffered']
    #allocation6 [shape = 's32[1]{0}', space=sflag, size = 0x4, scoped, tag = 'scoped memory for tpu_custom_call.1']
    #allocation7 [shape = 'u8[262144]{0}', space=vmem, size = 0x40000, scoped, tag = 'output window, operand 0']
    #allocation8 [shape = 'u8[65536]{0}', space=vmem, size = 0x10000, scoped, tag = 'output window, operand 1']
    #allocation9 [shape = 'u8[262144]{0}', space=vmem, size = 0x40000, scoped, tag = 'output window, operand 2']
    %12 = vsyncpa [#allocation3], 0
    %s13 = scalar_lea.sflag [#allocation3], 1
    %14 = vsyncpa %s13, 0
    %15 = vsyncpa [#allocation6], 0
    %16 = vsyncpa [#allocation4], 0
    %s17 = scalar_lea.sflag [#allocation4], 1
    %18 = vsyncpa %s17, 0
    loop: start=0, step=1, limit=6
    $region2: #{tpu_custom_call.1} parent=1 // loop_pre_header
      _
    $region3: #{tpu_custom_call.1} parent=1 // loop_header
      %s20 = sphi 0, %s24
      %p21 = scmp.ge.s32.totalorder %s20, 6
      %s27 = sphi 0, %s39
      %s28 = sphi 0, %s35
      %s29 = sphi 0, %s27
      %s30 = sphi 0, %s28
      %s31 = sphi 0, %s29
      %s32 = sphi 0, %s30
      %s44 = sphi 0, %s46
      %s47 = sphi 0, %s44
      %s48 = sphi 0, %s47
      %s64 = sphi 0, %s48
      %s68 = sphi 0, %s68
      %s70 = sphi 0, %s68
      %s71 = sphi 0, %s70
      %s85 = sphi 0, %s71
      %s89 = sphi 0, %s89
      %s91 = sphi 0, %s89
      %s92 = sphi 0, %s91
      %s106 = sphi 0, %s92
      %s110 = sphi 0, %s110
      %s112 = sphi 0, %s110
      %s113 = sphi 0, %s112
      %s127 = sphi 0, %s113
      %s135 = sphi 0, %s137
      %s138 = sphi 0, %s135
      %s139 = sphi 0, %s138
      %s155 = sphi 0, %s139
      %s163 = sphi 0, %s165
      %s166 = sphi 0, %s163
      %s167 = sphi 0, %s166
      %s183 = sphi 0, %s167
      %s191 = sphi 0, %s193
      %s194 = sphi 0, %s191
      %s195 = sphi 0, %s194
      %s211 = sphi 0, %s195
    $region4: #{tpu_custom_call.1} parent=1 // loop_header_branch
      %23 = sbr.rel (%p21) target = $region8
    $region5: #{tpu_custom_call.1} parent=1 // loop_body
      %s25 = ssub.s32 %s20, 1
      %s26 = ssub.s32 %s20, 2
      %s33 = sadd.s32 1, %s28
      %p34 = scmp.ge.s32.totalorder %s33, 2
      %s35 = scalar_select %p34, 0, %s33
      %s36 = sadd.s32 1, %s27
      %s37 = scalar_select %p34, %s36, %s27
      %p38 = scmp.ge.s32.totalorder %s37, 2
      %s39 = scalar_select %p38, 0, %s37
      %s40 = ssub.s32 %s27, %s39
      %s41 = ssub.s32 %s28, %s35
      %s42 = sor.u32 %s40, %s41
      %p43 = scmp.eq.s32.totalorder %s42, 0
      %s45 = sadd.s32 %s44, 1
      %s46 = scalar_select %p43, %s44, %s45
      %p49 = pneg %p43
      %p50 = scmp.eq.s32.totalorder %s20, 3
      %p51 = por %p49, %p50
      %p52 = scmp.ne.s32.totalorder %s44, %s47
      %p53 = scmp.eq.s32.totalorder %s20, 0
      %p54 = por %p52, %p53
      %p55 = scmp.ne.s32.totalorder %s44, %s47
      %p56 = scmp.eq.s32.totalorder %s25, 3
      %p57 = por %p55, %p56
      %p58 = scmp.ne.s32.totalorder %s47, %s48
      %p59 = scmp.eq.s32.totalorder %s25, 0
      %p60 = por %p58, %p59
      %p61 = scmp.ne.s32.totalorder %s47, %s48
      %p62 = scmp.eq.s32.totalorder %s26, 3
      %p63 = por %p61, %p62
      %p65 = scmp.ne.s32.totalorder %s48, %s64
      %p66 = scmp.eq.s32.totalorder %s26, 0
      %p67 = por %p65, %p66
      %s69 = sadd.s32 %s68, 1
      %p72 = scmp.eq.s32.totalorder %s20, 3
      %p73 = scmp.ne.s32.totalorder %s68, %s70
      %p74 = scmp.eq.s32.totalorder %s20, 0
      %p75 = por %p73, %p74
      %p76 = scmp.ne.s32.totalorder %s68, %s70
      %p77 = scmp.eq.s32.totalorder %s25, 3
      %p78 = por %p76, %p77
      %p79 = scmp.ne.s32.totalorder %s70, %s71
      %p80 = scmp.eq.s32.totalorder %s25, 0
      %p81 = por %p79, %p80
      %p82 = scmp.ne.s32.totalorder %s70, %s71
      %p83 = scmp.eq.s32.totalorder %s26, 3
      %p84 = por %p82, %p83
      %p86 = scmp.ne.s32.totalorder %s71, %s85
      %p87 = scmp.eq.s32.totalorder %s26, 0
      %p88 = por %p86, %p87
      %s90 = sadd.s32 %s89, 1
      %p93 = scmp.eq.s32.totalorder %s20, 3
      %p94 = scmp.ne.s32.totalorder %s89, %s91
      %p95 = scmp.eq.s32.totalorder %s20, 0
      %p96 = por %p94, %p95
      %p97 = scmp.ne.s32.totalorder %s89, %s91
      %p98 = scmp.eq.s32.totalorder %s25, 3
      %p99 = por %p97, %p98
      %p100 = scmp.ne.s32.totalorder %s91, %s92
      %p101 = scmp.eq.s32.totalorder %s25, 0
      %p102 = por %p100, %p101
      %p103 = scmp.ne.s32.totalorder %s91, %s92
      %p104 = scmp.eq.s32.totalorder %s26, 3
      %p105 = por %p103, %p104
      %p107 = scmp.ne.s32.totalorder %s92, %s106
      %p108 = scmp.eq.s32.totalorder %s26, 0
      %p109 = por %p107, %p108
      %s111 = sadd.s32 %s110, 1
      %p114 = scmp.eq.s32.totalorder %s20, 3
      %p115 = scmp.ne.s32.totalorder %s110, %s112
      %p116 = scmp.eq.s32.totalorder %s20, 0
      %p117 = por %p115, %p116
      %p118 = scmp.ne.s32.totalorder %s110, %s112
      %p119 = scmp.eq.s32.totalorder %s25, 3
      %p120 = por %p118, %p119
      %p121 = scmp.ne.s32.totalorder %s112, %s113
      %p122 = scmp.eq.s32.totalorder %s25, 0
      %p123 = por %p121, %p122
      %p124 = scmp.ne.s32.totalorder %s112, %s113
      %p125 = scmp.eq.s32.totalorder %s26, 3
      %p126 = por %p124, %p125
      %p128 = scmp.ne.s32.totalorder %s113, %s127
      %p129 = scmp.eq.s32.totalorder %s26, 0
      %p130 = por %p128, %p129
      %s131 = ssub.s32 %s27, %s39
      %s132 = ssub.s32 %s28, %s35
      %s133 = sor.u32 %s131, %s132
      %p134 = scmp.eq.s32.totalorder %s133, 0
      %s136 = sadd.s32 %s135, 1
      %s137 = scalar_select %p134, %s135, %s136
      %p140 = pneg %p134
      %p141 = scmp.eq.s32.totalorder %s20, 3
      %p142 = por %p140, %p141
      %p143 = scmp.ne.s32.totalorder %s135, %s138
      %p144 = scmp.eq.s32.totalorder %s20, 0
      %p145 = por %p143, %p144
      %p146 = scmp.ne.s32.totalorder %s135, %s138
      %p147 = scmp.eq.s32.totalorder %s25, 3
      %p148 = por %p146, %p147
      %p149 = scmp.ne.s32.totalorder %s138, %s139
      %p150 = scmp.eq.s32.totalorder %s25, 0
      %p151 = por %p149, %p150
      %p152 = scmp.ne.s32.totalorder %s138, %s139
      %p153 = scmp.eq.s32.totalorder %s26, 3
      %p154 = por %p152, %p153
      %p156 = scmp.ne.s32.totalorder %s139, %s155
      %p157 = scmp.eq.s32.totalorder %s26, 0
      %p158 = por %p156, %p157
      %s159 = ssub.s32 %s27, %s39
      %s160 = ssub.s32 %s28, %s35
      %s161 = sor.u32 %s159, %s160
      %p162 = scmp.eq.s32.totalorder %s161, 0
      %s164 = sadd.s32 %s163, 1
      %s165 = scalar_select %p162, %s163, %s164
      %p168 = pneg %p162
      %p169 = scmp.eq.s32.totalorder %s20, 3
      %p170 = por %p168, %p169
      %p171 = scmp.ne.s32.totalorder %s163, %s166
      %p172 = scmp.eq.s32.totalorder %s20, 0
      %p173 = por %p171, %p172
      %p174 = scmp.ne.s32.totalorder %s163, %s166
      %p175 = scmp.eq.s32.totalorder %s25, 3
      %p176 = por %p174, %p175
      %p177 = scmp.ne.s32.totalorder %s166, %s167
      %p178 = scmp.eq.s32.totalorder %s25, 0
      %p179 = por %p177, %p178
      %p180 = scmp.ne.s32.totalorder %s166, %s167
      %p181 = scmp.eq.s32.totalorder %s26, 3
      %p182 = por %p180, %p181
      %p184 = scmp.ne.s32.totalorder %s167, %s183
      %p185 = scmp.eq.s32.totalorder %s26, 0
      %p186 = por %p184, %p185
      %s187 = ssub.s32 %s27, %s39
      %s188 = ssub.s32 %s28, %s35
      %s189 = sor.u32 %s187, %s188
      %p190 = scmp.eq.s32.totalorder %s189, 0
      %s192 = sadd.s32 %s191, 1
      %s193 = scalar_select %p190, %s191, %s192
      %p196 = pneg %p190
      %p197 = scmp.eq.s32.totalorder %s20, 3
      %p198 = por %p196, %p197
      %p199 = scmp.ne.s32.totalorder %s191, %s194
      %p200 = scmp.eq.s32.totalorder %s20, 0
      %p201 = por %p199, %p200
      %p202 = scmp.ne.s32.totalorder %s191, %s194
      %p203 = scmp.eq.s32.totalorder %s25, 3
      %p204 = por %p202, %p203
      %p205 = scmp.ne.s32.totalorder %s194, %s195
      %p206 = scmp.eq.s32.totalorder %s25, 0
      %p207 = por %p205, %p206
      %p208 = scmp.ne.s32.totalorder %s194, %s195
      %p209 = scmp.eq.s32.totalorder %s26, 3
      %p210 = por %p208, %p209
      %p212 = scmp.ne.s32.totalorder %s195, %s211
      %p213 = scmp.eq.s32.totalorder %s26, 0
      %p214 = por %p212, %p213
      %p215 = scmp.le.s32.totalorder 1, %s20
      %p216 = scmp.lt.s32.totalorder %s20, 5
      %p217 = pnand %p215, %p216
      %p218 = pneg %p217
      // Predicated region
      $region9: #{tpu_custom_call.1} parent=5 // pred_check
        _
      $region10: #{tpu_custom_call.1} parent=5 // pred_check_branch
        %220 = sbr.rel (%p217) target = $region12
      $region11: #{tpu_custom_call.1} parent=5 // pred_region
        %s221 = ssub.s32 %s20, 1
        // Predicated region
        $region13: #{tpu_custom_call.1} parent=11 // pred_check
          %p222 = pneg %p81
        $region14: #{tpu_custom_call.1} parent=11 // pred_check_branch
          %224 = sbr.rel (%p222) target = $region16
        $region15: #{tpu_custom_call.1} parent=11 // pred_region
          _
        $region16: #{tpu_custom_call.1} parent=11 // pred_fallthru
          _
        // Predicated region
        $region17: #{tpu_custom_call.1} parent=11 // pred_check
          %p225 = pneg %p102
        $region18: #{tpu_custom_call.1} parent=11 // pred_check_branch
          %227 = sbr.rel (%p225) target = $region20
        $region19: #{tpu_custom_call.1} parent=11 // pred_region
          _
        $region20: #{tpu_custom_call.1} parent=11 // pred_fallthru
          _
        // Predicated region
        $region21: #{tpu_custom_call.1} parent=11 // pred_check
          %p228 = pneg %p123
        $region22: #{tpu_custom_call.1} parent=11 // pred_check_branch
          %230 = sbr.rel (%p228) target = $region24
        $region23: #{tpu_custom_call.1} parent=11 // pred_region
          %s232 = ssub.s32 3072, 3072
          %233 = vsyncadd [#allocation6], %s232
          %s234 = sshll.u32 [#allocation5], 4
          %s235 = int_to_ptr.vmem [resolvable:$true] %s234
          %240 = dma.hbm_to_vmem [thread:$0]  %s3, 3072, %s235, [#allocation6], 192, 192, 12
        $region24: #{tpu_custom_call.1} parent=11 // pred_fallthru
          _
      $region12: #{tpu_custom_call.1} parent=5 // pred_fallthru
        _
      %p241 = scmp.lt.s32.totalorder %s20, 4
      // Predicated region
      $region25: #{tpu_custom_call.1} parent=5 // pred_check
        %p242 = pneg %p241
      $region26: #{tpu_custom_call.1} parent=5 // pred_check_branch
        %244 = sbr.rel (%p242) target = $region28
      $region27: #{tpu_custom_call.1} parent=5 // pred_region
        // Predicated region
        $region29: #{tpu_custom_call.1} parent=27 // pred_check
          %p245 = pneg %p54
        $region30: #{tpu_custom_call.1} parent=27 // pred_check_branch
          %247 = sbr.rel (%p245) target = $region32
        $region31: #{tpu_custom_call.1} parent=27 // pred_region
          %s248 = sand.u32 %s44, 1
          %s249 = scalar_lea.sflag [#allocation3], %s248
          %s250 = sand.u32 %s44, 1
          %s251 = smul.addr %s250, 128
          %s252 = scalar_lea.vmem [#allocation2], %s251
          %s253 = smul.u32 16, %s28
          %s255 = ssub.s32 2048, 2048
          %256 = vsyncadd %s249, %s255
          %s257 = smul.addr %s27, 32
          %s258 = sadd.s32 %s253, %s257
          %s259 = smul.addr %s258, 128
          %s260 = scalar_lea.hbm %s0, %s259
          %s261 = sshll.u32 %s252, 4
          %s262 = int_to_ptr.vmem [resolvable:$true] %s261
          %267 = dma.hbm_to_vmem [thread:$0]  %s260, 2048, %s262, %s249, 128, 128, 8
        $region32: #{tpu_custom_call.1} parent=27 // pred_fallthru
          _
      $region28: #{tpu_custom_call.1} parent=5 // pred_fallthru
        _
      %p268 = scmp.le.s32.totalorder 1, %s20
      %p269 = scmp.lt.s32.totalorder %s20, 5
      %p270 = pnand %p268, %p269
      %p271 = pneg %p270
      // Predicated region
      $region33: #{tpu_custom_call.1} parent=5 // pred_check
        _
      $region34: #{tpu_custom_call.1} parent=5 // pred_check_branch
        %273 = sbr.rel (%p270) target = $region36
      $region35: #{tpu_custom_call.1} parent=5 // pred_region
        %s274 = ssub.s32 %s20, 1
        %s275 = sand.u32 %s47, 1
        %s276 = scalar_lea.sflag [#allocation3], %s275
        %s277 = sand.u32 %s47, 1
        %s278 = smul.addr %s277, 128
        %s279 = scalar_lea.vmem [#allocation2], %s278
        // Predicated region
        $region37: #{tpu_custom_call.1} parent=35 // pred_check
          %p280 = pneg %p60
        $region38: #{tpu_custom_call.1} parent=35 // pred_check_branch
          %282 = sbr.rel (%p280) target = $region40
        $region39: #{tpu_custom_call.1} parent=35 // pred_region
          %283 = dma.done %s276, 2048
        $region40: #{tpu_custom_call.1} parent=35 // pred_fallthru
          _
        // Predicated region
        $region41: #{tpu_custom_call.1} parent=35 // pred_check
          %p284 = pneg %p123
        $region42: #{tpu_custom_call.1} parent=35 // pred_check_branch
          %286 = sbr.rel (%p284) target = $region44
        $region43: #{tpu_custom_call.1} parent=35 // pred_region
          %287 = dma.done [#allocation6], 3072
        $region44: #{tpu_custom_call.1} parent=35 // pred_fallthru
          _
        %s288 = sand.u32 %s47, 1
        %s289 = scalar_lea.sflag [#allocation3], %s288
        %s290 = sand.u32 %s47, 1
        %s291 = smul.addr %s290, 128
        %s292 = scalar_lea.vmem [#allocation2], %s291
        %p293 = pneg %p60
        %p294 = pneg %p57
        %p295 = pneg %p81
        %p296 = pneg %p78
        %p297 = pneg %p102
        %p298 = pneg %p99
        %p299 = pneg %p123
        %p300 = pneg %p120
        %p301 = pneg %p151
        %p302 = pneg %p148
        %s303 = sand.u32 %s138, 1
        %s304 = sand.u32 %s138, 1
        %s305 = smul.addr %s304, 256
        %s306 = scalar_lea.vmem [#allocation7], %s305
        %p307 = pneg %p179
        %p308 = pneg %p176
        %s309 = sand.u32 %s166, 1
        %s310 = scalar_lea.sflag [#allocation4], %s309
        %s311 = sand.u32 %s166, 1
        %s312 = smul.addr %s311, 64
        %s313 = scalar_lea.vmem [#allocation8], %s312
        %p314 = pneg %p207
        %p315 = pneg %p204
        %s316 = sand.u32 %s194, 1
        %s317 = sand.u32 %s194, 1
        %s318 = smul.addr %s317, 256
        %s319 = scalar_lea.vmem [#allocation9], %s318
        %s320 = smul.u32 16, %s30
        %s321 = smul.u32 16, %s30
        %s322 = smul.u32 16, %s30
        %v324 = vld [vmem:[%s279] sm:$0xff]
        %v325 = vld [vmem:[%s279 + $0x8] sm:$0xff]
        %v326 = vld [vmem:[%s279 + $0x10] sm:$0xff]
        %v327 = vld [vmem:[%s279 + $0x18] sm:$0xff]
        %v328 = vld [vmem:[%s279 + $0x20] sm:$0xff]
        %v329 = vld [vmem:[%s279 + $0x28] sm:$0xff]
        %v330 = vld [vmem:[%s279 + $0x30] sm:$0xff]
        %v331 = vld [vmem:[%s279 + $0x38] sm:$0xff]
        %v332 = vld [vmem:[%s279 + $0x40] sm:$0xff]
        %v333 = vld [vmem:[%s279 + $0x48] sm:$0xff]
        %v334 = vld [vmem:[%s279 + $0x50] sm:$0xff]
        %v335 = vld [vmem:[%s279 + $0x58] sm:$0xff]
        %v336 = vld [vmem:[%s279 + $0x60] sm:$0xff]
        %v337 = vld [vmem:[%s279 + $0x68] sm:$0xff]
        %v338 = vld [vmem:[%s279 + $0x70] sm:$0xff]
        %v339 = vld [vmem:[%s279 + $0x78] sm:$0xff]
        %v340 = vld [vmem:[%s1] sm:$0x1]
        %v341 = vld [vmem:[%s2] sm:$0x1]
        %342 = vadd.xlane.f32.xlu0 %v324
        %v343 = vpop.xlane.xlu0 %342
        %344 = vadd.xlane.f32.xlu0 %v325
        %v345 = vpop.xlane.xlu0 %344
        %346 = vadd.xlane.f32.xlu0 %v326
        %v347 = vpop.xlane.xlu0 %346
        %348 = vadd.xlane.f32.xlu0 %v327
        %v349 = vpop.xlane.xlu0 %348
        %350 = vadd.xlane.f32.xlu0 %v328
        %v351 = vpop.xlane.xlu0 %350
        %352 = vadd.xlane.f32.xlu0 %v329
        %v353 = vpop.xlane.xlu0 %352
        %354 = vadd.xlane.f32.xlu0 %v330
        %v355 = vpop.xlane.xlu0 %354
        %356 = vadd.xlane.f32.xlu0 %v331
        %v357 = vpop.xlane.xlu0 %356
        %358 = vadd.xlane.f32.xlu0 %v332
        %v359 = vpop.xlane.xlu0 %358
        %360 = vadd.xlane.f32.xlu0 %v333
        %v361 = vpop.xlane.xlu0 %360
        %362 = vadd.xlane.f32.xlu0 %v334
        %v363 = vpop.xlane.xlu0 %362
        %364 = vadd.xlane.f32.xlu0 %v335
        %v365 = vpop.xlane.xlu0 %364
        %366 = vadd.xlane.f32.xlu0 %v336
        %v367 = vpop.xlane.xlu0 %366
        %368 = vadd.xlane.f32.xlu0 %v337
        %v369 = vpop.xlane.xlu0 %368
        %370 = vadd.xlane.f32.xlu0 %v338
        %v371 = vpop.xlane.xlu0 %370
        %372 = vadd.xlane.f32.xlu0 %v339
        %v373 = vpop.xlane.xlu0 %372
        %v374 = vrcp.pop 128.0
        %v375 = vmul.f32 %v343, %v374
        %v376 = vmul.f32 %v345, %v374
        %v377 = vmul.f32 %v347, %v374
        %v378 = vmul.f32 %v349, %v374
        %v379 = vmul.f32 %v351, %v374
        %v380 = vmul.f32 %v353, %v374
        %v381 = vmul.f32 %v355, %v374
        %v382 = vmul.f32 %v357, %v374
        %v383 = vmul.f32 %v359, %v374
        %v384 = vmul.f32 %v361, %v374
        %v385 = vmul.f32 %v363, %v374
        %v386 = vmul.f32 %v365, %v374
        %v387 = vmul.f32 %v367, %v374
        %v388 = vmul.f32 %v369, %v374
        %v389 = vmul.f32 %v371, %v374
        %v390 = vmul.f32 %v373, %v374
        %v391 = vsub.f32 %v324, %v375
        %v392 = vsub.f32 %v325, %v376
        %v393 = vsub.f32 %v326, %v377
        %v394 = vsub.f32 %v327, %v378
        %v395 = vsub.f32 %v328, %v379
        %v396 = vsub.f32 %v329, %v380
        %v397 = vsub.f32 %v330, %v381
        %v398 = vsub.f32 %v331, %v382
        %v399 = vsub.f32 %v332, %v383
        %v400 = vsub.f32 %v333, %v384
        %v401 = vsub.f32 %v334, %v385
        %v402 = vsub.f32 %v335, %v386
        %v403 = vsub.f32 %v336, %v387
        %v404 = vsub.f32 %v337, %v388
        %v405 = vsub.f32 %v338, %v389
        %v406 = vsub.f32 %v339, %v390
        %v407 = vmul.f32 %v391, %v391
        %v408 = vmul.f32 %v392, %v392
        %v409 = vmul.f32 %v393, %v393
        %v410 = vmul.f32 %v394, %v394
        %v411 = vmul.f32 %v395, %v395
        %v412 = vmul.f32 %v396, %v396
        %v413 = vmul.f32 %v397, %v397
        %v414 = vmul.f32 %v398, %v398
        %v415 = vmul.f32 %v399, %v399
        %v416 = vmul.f32 %v400, %v400
        %v417 = vmul.f32 %v401, %v401
        %v418 = vmul.f32 %v402, %v402
        %v419 = vmul.f32 %v403, %v403
        %v420 = vmul.f32 %v404, %v404
        %v421 = vmul.f32 %v405, %v405
        %v422 = vmul.f32 %v406, %v406
        %423 = vadd.xlane.f32.xlu0 %v407
        %v424 = vpop.xlane.xlu0 %423
        %425 = vadd.xlane.f32.xlu0 %v408
        %v426 = vpop.xlane.xlu0 %425
        %427 = vadd.xlane.f32.xlu0 %v409
        %v428 = vpop.xlane.xlu0 %427
        %429 = vadd.xlane.f32.xlu0 %v410
        %v430 = vpop.xlane.xlu0 %429
        %431 = vadd.xlane.f32.xlu0 %v411
        %v432 = vpop.xlane.xlu0 %431
        %433 = vadd.xlane.f32.xlu0 %v412
        %v434 = vpop.xlane.xlu0 %433
        %435 = vadd.xlane.f32.xlu0 %v413
        %v436 = vpop.xlane.xlu0 %435
        %437 = vadd.xlane.f32.xlu0 %v414
        %v438 = vpop.xlane.xlu0 %437
        %439 = vadd.xlane.f32.xlu0 %v415
        %v440 = vpop.xlane.xlu0 %439
        %441 = vadd.xlane.f32.xlu0 %v416
        %v442 = vpop.xlane.xlu0 %441
        %443 = vadd.xlane.f32.xlu0 %v417
        %v444 = vpop.xlane.xlu0 %443
        %445 = vadd.xlane.f32.xlu0 %v418
        %v446 = vpop.xlane.xlu0 %445
        %447 = vadd.xlane.f32.xlu0 %v419
        %v448 = vpop.xlane.xlu0 %447
        %449 = vadd.xlane.f32.xlu0 %v420
        %v450 = vpop.xlane.xlu0 %449
        %451 = vadd.xlane.f32.xlu0 %v421
        %v452 = vpop.xlane.xlu0 %451
        %453 = vadd.xlane.f32.xlu0 %v422
        %v454 = vpop.xlane.xlu0 %453
        %v455 = vmul.f32 %v424, %v374
        %v456 = vmul.f32 %v426, %v374
        %v457 = vmul.f32 %v428, %v374
        %v458 = vmul.f32 %v430, %v374
        %v459 = vmul.f32 %v432, %v374
        %v460 = vmul.f32 %v434, %v374
        %v461 = vmul.f32 %v436, %v374
        %v462 = vmul.f32 %v438, %v374
        %v463 = vmul.f32 %v440, %v374
        %v464 = vmul.f32 %v442, %v374
        %v465 = vmul.f32 %v444, %v374
        %v466 = vmul.f32 %v446, %v374
        %v467 = vmul.f32 %v448, %v374
        %v468 = vmul.f32 %v450, %v374
        %v469 = vmul.f32 %v452, %v374
        %v470 = vmul.f32 %v454, %v374
        %v471 = vadd.f32 %v455, 1e-05
        %v472 = vadd.f32 %v456, 1e-05
        %v473 = vadd.f32 %v457, 1e-05
        %v474 = vadd.f32 %v458, 1e-05
        %v475 = vadd.f32 %v459, 1e-05
        %v476 = vadd.f32 %v460, 1e-05
        %v477 = vadd.f32 %v461, 1e-05
        %v478 = vadd.f32 %v462, 1e-05
        %v479 = vadd.f32 %v463, 1e-05
        %v480 = vadd.f32 %v464, 1e-05
        %v481 = vadd.f32 %v465, 1e-05
        %v482 = vadd.f32 %v466, 1e-05
        %v483 = vadd.f32 %v467, 1e-05
        %v484 = vadd.f32 %v468, 1e-05
        %v485 = vadd.f32 %v469, 1e-05
        %v486 = vadd.f32 %v470, 1e-05
        %v487 = vrsqrt.pop %v471
        %v488 = vrsqrt.pop %v472
        %v489 = vrsqrt.pop %v473
        %v490 = vrsqrt.pop %v474
        %v491 = vrsqrt.pop %v475
        %v492 = vrsqrt.pop %v476
        %v493 = vrsqrt.pop %v477
        %v494 = vrsqrt.pop %v478
        %v495 = vrsqrt.pop %v479
        %v496 = vrsqrt.pop %v480
        %v497 = vrsqrt.pop %v481
        %v498 = vrsqrt.pop %v482
        %v499 = vrsqrt.pop %v483
        %v500 = vrsqrt.pop %v484
        %v501 = vrsqrt.pop %v485
        %v502 = vrsqrt.pop %v486
        %v503 = vmul.f32 %v391, %v487
        %v504 = vmul.f32 %v392, %v488
        %v505 = vmul.f32 %v393, %v489
        %v506 = vmul.f32 %v394, %v490
        %v507 = vmul.f32 %v395, %v491
        %v508 = vmul.f32 %v396, %v492
        %v509 = vmul.f32 %v397, %v493
        %v510 = vmul.f32 %v398, %v494
        %v511 = vmul.f32 %v399, %v495
        %v512 = vmul.f32 %v400, %v496
        %v513 = vmul.f32 %v401, %v497
        %v514 = vmul.f32 %v402, %v498
        %v515 = vmul.f32 %v403, %v499
        %v516 = vmul.f32 %v404, %v500
        %v517 = vmul.f32 %v405, %v501
        %v518 = vmul.f32 %v406, %v502
        %v520 = vlaneseq
        %v521 = vshrl.u32 %v520, 7
        %v522 = vsub.s32 0, %v521
        %v523 = vrot.slane %v340, %v522
        %v525 = vmul.f32 %v503, %v523
        %v526 = vmul.f32 %v504, %v523
        %v527 = vmul.f32 %v505, %v523
        %v528 = vmul.f32 %v506, %v523
        %v529 = vmul.f32 %v507, %v523
        %v530 = vmul.f32 %v508, %v523
        %v531 = vmul.f32 %v509, %v523
        %v532 = vmul.f32 %v510, %v523
        %v533 = vmul.f32 %v511, %v523
        %v534 = vmul.f32 %v512, %v523
        %v535 = vmul.f32 %v513, %v523
        %v536 = vmul.f32 %v514, %v523
        %v537 = vmul.f32 %v515, %v523
        %v538 = vmul.f32 %v516, %v523
        %v539 = vmul.f32 %v517, %v523
        %v540 = vmul.f32 %v518, %v523
        %v542 = vlaneseq
        %v543 = vshrl.u32 %v542, 7
        %v544 = vsub.s32 0, %v543
        %v545 = vrot.slane %v341, %v544
        %v547 = vadd.f32 %v525, %v545
        %v548 = vadd.f32 %v526, %v545
        %v549 = vadd.f32 %v527, %v545
        %v550 = vadd.f32 %v528, %v545
        %v551 = vadd.f32 %v529, %v545
        %v552 = vadd.f32 %v530, %v545
        %v553 = vadd.f32 %v531, %v545
        %v554 = vadd.f32 %v532, %v545
        %v555 = vadd.f32 %v533, %v545
        %v556 = vadd.f32 %v534, %v545
        %v557 = vadd.f32 %v535, %v545
        %v558 = vadd.f32 %v536, %v545
        %v559 = vadd.f32 %v537, %v545
        %v560 = vadd.f32 %v538, %v545
        %v561 = vadd.f32 %v539, %v545
        %v562 = vadd.f32 %v540, %v545
        %v563 = vpack.c.bf16 %v548, %v547
        %v564 = vpack.c.bf16 %v550, %v549
        %v565 = vpack.c.bf16 %v552, %v551
        %v566 = vpack.c.bf16 %v554, %v553
        %v567 = vpack.c.bf16 %v556, %v555
        %v568 = vpack.c.bf16 %v558, %v557
        %v569 = vpack.c.bf16 %v560, %v559
        %v570 = vpack.c.bf16 %v562, %v561
        %v571 = vld [vmem:[#allocation5] sm:$0xff]
        %v572 = vld [vmem:[#allocation5 + $0x8] sm:$0xf]
        %v573 = vld [vmem:[#allocation5 + $0xc] sm:$0xff]
        %v574 = vld [vmem:[#allocation5 + $0x14] sm:$0xf]
        %v575 = vld [vmem:[#allocation5 + $0x18] sm:$0xff]
        %v576 = vld [vmem:[#allocation5 + $0x20] sm:$0xf]
        %v577 = vld [vmem:[#allocation5 + $0x24] sm:$0xff]
        %v578 = vld [vmem:[#allocation5 + $0x2c] sm:$0xf]
        %v579 = vld [vmem:[#allocation5 + $0x30] sm:$0xff]
        %v580 = vld [vmem:[#allocation5 + $0x38] sm:$0xf]
        %v581 = vld [vmem:[#allocation5 + $0x3c] sm:$0xff]
        %v582 = vld [vmem:[#allocation5 + $0x44] sm:$0xf]
        %v583 = vld [vmem:[#allocation5 + $0x48] sm:$0xff]
        %v584 = vld [vmem:[#allocation5 + $0x50] sm:$0xf]
        %v585 = vld [vmem:[#allocation5 + $0x54] sm:$0xff]
        %v586 = vld [vmem:[#allocation5 + $0x5c] sm:$0xf]
        %v587 = vld [vmem:[#allocation5 + $0x60] sm:$0xff]
        %v588 = vld [vmem:[#allocation5 + $0x68] sm:$0xf]
        %v589 = vld [vmem:[#allocation5 + $0x6c] sm:$0xff]
        %v590 = vld [vmem:[#allocation5 + $0x74] sm:$0xf]
        %v591 = vld [vmem:[#allocation5 + $0x78] sm:$0xff]
        %v592 = vld [vmem:[#allocation5 + $0x80] sm:$0xf]
        %v593 = vld [vmem:[#allocation5 + $0x84] sm:$0xff]
        %v594 = vld [vmem:[#allocation5 + $0x8c] sm:$0xf]
        %v595 = vld [vmem:[#allocation5 + $0x90] sm:$0xff]
        %v596 = vld [vmem:[#allocation5 + $0x98] sm:$0xf]
        %v597 = vld [vmem:[#allocation5 + $0x9c] sm:$0xff]
        %v598 = vld [vmem:[#allocation5 + $0xa4] sm:$0xf]
        %v599 = vld [vmem:[#allocation5 + $0xa8] sm:$0xff]
        %v600 = vld [vmem:[#allocation5 + $0xb0] sm:$0xf]
        %v601 = vld [vmem:[#allocation5 + $0xb4] sm:$0xff]
        %v602 = vld [vmem:[#allocation5 + $0xbc] sm:$0xf]
        %v635 = vunpack.c.l.b16 %v571
        %v636 = vunpack.c.h.b16 %v571
        %v637 = vunpack.c.l.b16 %v572
        %v638 = vunpack.c.l.b16 %v573
        %v639 = vunpack.c.h.b16 %v573
        %v640 = vunpack.c.l.b16 %v574
        %v641 = vunpack.c.l.b16 %v575
        %v642 = vunpack.c.h.b16 %v575
        %v643 = vunpack.c.l.b16 %v576
        %v644 = vunpack.c.l.b16 %v577
        %v645 = vunpack.c.h.b16 %v577
        %v646 = vunpack.c.l.b16 %v578
        %v647 = vunpack.c.l.b16 %v579
        %v648 = vunpack.c.h.b16 %v579
        %v649 = vunpack.c.l.b16 %v580
        %v650 = vunpack.c.l.b16 %v581
        %v651 = vunpack.c.h.b16 %v581
        %v652 = vunpack.c.l.b16 %v582
        %v653 = vunpack.c.l.b16 %v583
        %v654 = vunpack.c.h.b16 %v583
        %v655 = vunpack.c.l.b16 %v584
        %v656 = vunpack.c.l.b16 %v585
        %v657 = vunpack.c.h.b16 %v585
        %v658 = vunpack.c.l.b16 %v586
        %v659 = vunpack.c.l.b16 %v587
        %v660 = vunpack.c.h.b16 %v587
        %v661 = vunpack.c.l.b16 %v588
        %v662 = vunpack.c.l.b16 %v589
        %v663 = vunpack.c.h.b16 %v589
        %v664 = vunpack.c.l.b16 %v590
        %v665 = vunpack.c.l.b16 %v591
        %v666 = vunpack.c.h.b16 %v591
        %v667 = vunpack.c.l.b16 %v592
        %v668 = vunpack.c.l.b16 %v593
        %v669 = vunpack.c.h.b16 %v593
        %v670 = vunpack.c.l.b16 %v594
        %v671 = vunpack.c.l.b16 %v595
        %v672 = vunpack.c.h.b16 %v595
        %v673 = vunpack.c.l.b16 %v596
        %v674 = vunpack.c.l.b16 %v597
        %v675 = vunpack.c.h.b16 %v597
        %v676 = vunpack.c.l.b16 %v598
        %v677 = vunpack.c.l.b16 %v599
        %v678 = vunpack.c.h.b16 %v599
        %v679 = vunpack.c.l.b16 %v600
        %v680 = vunpack.c.l.b16 %v601
        %v681 = vunpack.c.h.b16 %v601
        %v682 = vunpack.c.l.b16 %v602
        %v683 = vpack.c.b16 %v638, %v635
        %v684 = vpack.c.b16 %v639, %v636
        %v685 = vpack.c.b16 %v640, %v637
        %v686 = vpack.c.b16 %v644, %v641
        %v687 = vpack.c.b16 %v645, %v642
        %v688 = vpack.c.b16 %v646, %v643
        %v689 = vpack.c.b16 %v650, %v647
        %v690 = vpack.c.b16 %v651, %v648
        %v691 = vpack.c.b16 %v652, %v649
        %v692 = vpack.c.b16 %v656, %v653
        %v693 = vpack.c.b16 %v657, %v654
        %v694 = vpack.c.b16 %v658, %v655
        %v695 = vpack.c.b16 %v662, %v659
        %v696 = vpack.c.b16 %v663, %v660
        %v697 = vpack.c.b16 %v664, %v661
        %v698 = vpack.c.b16 %v668, %v665
        %v699 = vpack.c.b16 %v669, %v666
        %v700 = vpack.c.b16 %v670, %v667
        %v701 = vpack.c.b16 %v674, %v671
        %v702 = vpack.c.b16 %v675, %v672
        %v703 = vpack.c.b16 %v676, %v673
        %v704 = vpack.c.b16 %v680, %v677
        %v705 = vpack.c.b16 %v681, %v678
        %v706 = vpack.c.b16 %v682, %v679
        %731 = vmatprep.subr.bf16.mxu0 %v705
        %732 = vmatpush1.bf16.msra.mxu0 %v704
        %733 = vmatprep.subr.bf16.mxu0 %v702
        %734 = vmatpush1.bf16.msra.mxu0 %v701
        %735 = vmatprep.subr.bf16.mxu0 %v699
        %736 = vmatpush1.bf16.msra.mxu0 %v698
        %737 = vmatprep.subr.bf16.mxu0 %v696
        %738 = vmatpush1.bf16.msra.mxu0 %v695
        %739 = vmatprep.subr.bf16.mxu0 %v693
        %740 = vmatpush1.bf16.msra.mxu0 %v692
        %741 = vmatprep.subr.bf16.mxu0 %v690
        %742 = vmatpush1.bf16.msra.mxu0 %v689
        %743 = vmatprep.subr.bf16.mxu0 %v687
        %744 = vmatpush1.bf16.msra.mxu0 %v686
        %745 = vmatprep.subr.bf16.mxu0 %v684
        %746 = vmatpush1.bf16.msra.mxu0 %v683
        %747 = vmatprep.subr.bf16.mxu0 0
        %748 = vmatpush2.bf16.msra.mxu0 0
        %749 = vmatprep.subr.bf16.mxu0 0
        %750 = vmatpush2.bf16.msra.mxu0 0
        %751 = vmatprep.subr.bf16.mxu0 0
        %752 = vmatpush2.bf16.msra.mxu0 0
        %753 = vmatprep.subr.bf16.mxu0 0
        %754 = vmatpush2.bf16.msra.mxu0 0
        %755 = vmatprep.subr.bf16.mxu0 0
        %756 = vmatpush2.bf16.msra.mxu0 0
        %757 = vmatprep.subr.bf16.mxu0 0
        %758 = vmatpush2.bf16.msra.mxu0 0
        %759 = vmatprep.subr.bf16.mxu0 0
        %760 = vmatpush2.bf16.msra.mxu0 0
        %761 = vmatprep.subr.bf16.mxu0 0
        %762 = vmatpush2.bf16.msra.mxu0 0
        %763 = vmatprep.mubr.bf16.mxu0 0
        %764 = vmatmul.mubr.bf16.gmra.mxu0 %v563
        %v765 = vpop.f32.mrf.mxu0
        %v766 = vadd.f32 0.0, %v765
        %v767 = vpop.f32.mrf.mxu0
        %v768 = vadd.f32 0.0, %v767
        %v769 = vpop.f32.mrf.mxu0
        %v770 = vadd.f32 0.0, %v769
        %v771 = vpop.f32.mrf.mxu0
        %v772 = vadd.f32 0.0, %v771
        %773 = vmatprep.mubr.bf16.mxu0 0
        %774 = vmatmul.mubr.bf16.gmra.mxu0 %v564
        %v775 = vpop.f32.mrf.mxu0
        %v776 = vadd.f32 0.0, %v775
        %v777 = vpop.f32.mrf.mxu0
        %v778 = vadd.f32 0.0, %v777
        %v779 = vpop.f32.mrf.mxu0
        %v780 = vadd.f32 0.0, %v779
        %v781 = vpop.f32.mrf.mxu0
        %v782 = vadd.f32 0.0, %v781
        %783 = vmatprep.mubr.bf16.mxu0 0
        %784 = vmatmul.mubr.bf16.gmra.mxu0 %v565
        %v785 = vpop.f32.mrf.mxu0
        %v786 = vadd.f32 0.0, %v785
        %v787 = vpop.f32.mrf.mxu0
        %v788 = vadd.f32 0.0, %v787
        %v789 = vpop.f32.mrf.mxu0
        %v790 = vadd.f32 0.0, %v789
        %v791 = vpop.f32.mrf.mxu0
        %v792 = vadd.f32 0.0, %v791
        %793 = vmatprep.mubr.bf16.mxu0 0
        %794 = vmatmul.mubr.bf16.gmra.mxu0 %v566
        %v795 = vpop.f32.mrf.mxu0
        %v796 = vadd.f32 0.0, %v795
        %v797 = vpop.f32.mrf.mxu0
        %v798 = vadd.f32 0.0, %v797
        %v799 = vpop.f32.mrf.mxu0
        %v800 = vadd.f32 0.0, %v799
        %v801 = vpop.f32.mrf.mxu0
        %v802 = vadd.f32 0.0, %v801
        %803 = vmatprep.mubr.bf16.mxu0 0
        %804 = vmatmul.mubr.bf16.gmra.mxu0 %v567
        %v805 = vpop.f32.mrf.mxu0
        %v806 = vadd.f32 0.0, %v805
        %v807 = vpop.f32.mrf.mxu0
        %v808 = vadd.f32 0.0, %v807
        %v809 = vpop.f32.mrf.mxu0
        %v810 = vadd.f32 0.0, %v809
        %v811 = vpop.f32.mrf.mxu0
        %v812 = vadd.f32 0.0, %v811
        %813 = vmatprep.mubr.bf16.mxu0 0
        %814 = vmatmul.mubr.bf16.gmra.mxu0 %v568
        %v815 = vpop.f32.mrf.mxu0
        %v816 = vadd.f32 0.0, %v815
        %v817 = vpop.f32.mrf.mxu0
        %v818 = vadd.f32 0.0, %v817
        %v819 = vpop.f32.mrf.mxu0
        %v820 = vadd.f32 0.0, %v819
        %v821 = vpop.f32.mrf.mxu0
        %v822 = vadd.f32 0.0, %v821
        %823 = vmatprep.mubr.bf16.mxu0 0
        %824 = vmatmul.mubr.bf16.gmra.mxu0 %v569
        %v825 = vpop.f32.mrf.mxu0
        %v826 = vadd.f32 0.0, %v825
        %v827 = vpop.f32.mrf.mxu0
        %v828 = vadd.f32 0.0, %v827
        %v829 = vpop.f32.mrf.mxu0
        %v830 = vadd.f32 0.0, %v829
        %v831 = vpop.f32.mrf.mxu0
        %v832 = vadd.f32 0.0, %v831
        %833 = vmatprep.mubr.bf16.mxu0 0
        %834 = vmatmul.mubr.bf16.gmra.mxu0 %v570
        %v835 = vpop.f32.mrf.mxu0
        %v836 = vadd.f32 0.0, %v835
        %v837 = vpop.f32.mrf.mxu0
        %v838 = vadd.f32 0.0, %v837
        %v839 = vpop.f32.mrf.mxu0
        %v840 = vadd.f32 0.0, %v839
        %v841 = vpop.f32.mrf.mxu0
        %v842 = vadd.f32 0.0, %v841
        %843 = vdwg.mxu0
        %844 = vmatprep.subr.bf16.mxu0 0
        %845 = vmatpush1.bf16.msra.mxu0 %v706
        %846 = vmatprep.subr.bf16.mxu0 0
        %847 = vmatpush1.bf16.msra.mxu0 %v703
        %848 = vmatprep.subr.bf16.mxu0 0
        %849 = vmatpush1.bf16.msra.mxu0 %v700
        %850 = vmatprep.subr.bf16.mxu0 0
        %851 = vmatpush1.bf16.msra.mxu0 %v697
        %852 = vmatprep.subr.bf16.mxu0 0
        %853 = vmatpush1.bf16.msra.mxu0 %v694
        %854 = vmatprep.subr.bf16.mxu0 0
        %855 = vmatpush1.bf16.msra.mxu0 %v691
        %856 = vmatprep.subr.bf16.mxu0 0
        %857 = vmatpush1.bf16.msra.mxu0 %v688
        %858 = vmatprep.subr.bf16.mxu0 0
        %859 = vmatpush1.bf16.msra.mxu0 %v685
        %860 = vmatprep.subr.bf16.mxu0 0
        %861 = vmatpush2.bf16.msra.mxu0 0
        %862 = vmatprep.subr.bf16.mxu0 0
        %863 = vmatpush2.bf16.msra.mxu0 0
        %864 = vmatprep.subr.bf16.mxu0 0
        %865 = vmatpush2.bf16.msra.mxu0 0
        %866 = vmatprep.subr.bf16.mxu0 0
        %867 = vmatpush2.bf16.msra.mxu0 0
        %868 = vmatprep.subr.bf16.mxu0 0
        %869 = vmatpush2.bf16.msra.mxu0 0
        %870 = vmatprep.subr.bf16.mxu0 0
        %871 = vmatpush2.bf16.msra.mxu0 0
        %872 = vmatprep.subr.bf16.mxu0 0
        %873 = vmatpush2.bf16.msra.mxu0 0
        %874 = vmatprep.subr.bf16.mxu0 0
        %875 = vmatpush2.bf16.msra.mxu0 0
        %876 = vmatprep.mubr.bf16.mxu0 0
        %877 = vmatmul.mubr.bf16.gmra.mxu0 %v563
        %v878 = vpop.f32.mrf.mxu0
        %v879 = vadd.f32 0.0, %v878
        %v880 = vpop.f32.mrf.mxu0
        %v881 = vpop.f32.mrf.mxu0
        %v882 = vadd.f32 0.0, %v881
        %v883 = vpop.f32.mrf.mxu0
        %884 = vmatprep.mubr.bf16.mxu0 0
        %885 = vmatmul.mubr.bf16.gmra.mxu0 %v564
        %v886 = vpop.f32.mrf.mxu0
        %v887 = vadd.f32 0.0, %v886
        %v888 = vpop.f32.mrf.mxu0
        %v889 = vpop.f32.mrf.mxu0
        %v890 = vadd.f32 0.0, %v889
        %v891 = vpop.f32.mrf.mxu0
        %892 = vmatprep.mubr.bf16.mxu0 0
        %893 = vmatmul.mubr.bf16.gmra.mxu0 %v565
        %v894 = vpop.f32.mrf.mxu0
        %v895 = vadd.f32 0.0, %v894
        %v896 = vpop.f32.mrf.mxu0
        %v897 = vpop.f32.mrf.mxu0
        %v898 = vadd.f32 0.0, %v897
        %v899 = vpop.f32.mrf.mxu0
        %900 = vmatprep.mubr.bf16.mxu0 0
        %901 = vmatmul.mubr.bf16.gmra.mxu0 %v566
        %v902 = vpop.f32.mrf.mxu0
        %v903 = vadd.f32 0.0, %v902
        %v904 = vpop.f32.mrf.mxu0
        %v905 = vpop.f32.mrf.mxu0
        %v906 = vadd.f32 0.0, %v905
        %v907 = vpop.f32.mrf.mxu0
        %908 = vmatprep.mubr.bf16.mxu0 0
        %909 = vmatmul.mubr.bf16.gmra.mxu0 %v567
        %v910 = vpop.f32.mrf.mxu0
        %v911 = vadd.f32 0.0, %v910
        %v912 = vpop.f32.mrf.mxu0
        %v913 = vpop.f32.mrf.mxu0
        %v914 = vadd.f32 0.0, %v913
        %v915 = vpop.f32.mrf.mxu0
        %916 = vmatprep.mubr.bf16.mxu0 0
        %917 = vmatmul.mubr.bf16.gmra.mxu0 %v568
        %v918 = vpop.f32.mrf.mxu0
        %v919 = vadd.f32 0.0, %v918
        %v920 = vpop.f32.mrf.mxu0
        %v921 = vpop.f32.mrf.mxu0
        %v922 = vadd.f32 0.0, %v921
        %v923 = vpop.f32.mrf.mxu0
        %924 = vmatprep.mubr.bf16.mxu0 0
        %925 = vmatmul.mubr.bf16.gmra.mxu0 %v569
        %v926 = vpop.f32.mrf.mxu0
        %v927 = vadd.f32 0.0, %v926
        %v928 = vpop.f32.mrf.mxu0
        %v929 = vpop.f32.mrf.mxu0
        %v930 = vadd.f32 0.0, %v929
        %v931 = vpop.f32.mrf.mxu0
        %932 = vmatprep.mubr.bf16.mxu0 0
        %933 = vmatmul.mubr.bf16.gmra.mxu0 %v570
        %v934 = vpop.f32.mrf.mxu0
        %v935 = vadd.f32 0.0, %v934
        %v936 = vpop.f32.mrf.mxu0
        %v937 = vpop.f32.mrf.mxu0
        %v938 = vadd.f32 0.0, %v937
        %v939 = vpop.f32.mrf.mxu0
        %940 = vdwg.mxu0
        %941 = vxpose.xlu0.b32.start [1/16] %v768, 128
        %942 = vxpose.xlu0.b32.cont [2/16] %v772, 128
        %943 = vxpose.xlu0.b32.cont [3/16] %v778, 128
        %944 = vxpose.xlu0.b32.cont [4/16] %v782, 128
        %945 = vxpose.xlu0.b32.cont [5/16] %v788, 128
        %946 = vxpose.xlu0.b32.cont [6/16] %v792, 128
        %947 = vxpose.xlu0.b32.cont [7/16] %v798, 128
        %948 = vxpose.xlu0.b32.cont [8/16] %v802, 128
        %949 = vxpose.xlu0.b32.cont [9/16] %v808, 128
        %950 = vxpose.xlu0.b32.cont [10/16] %v812, 128
        %951 = vxpose.xlu0.b32.cont [11/16] %v818, 128
        %952 = vxpose.xlu0.b32.cont [12/16] %v822, 128
        %953 = vxpose.xlu0.b32.cont [13/16] %v828, 128
        %954 = vxpose.xlu0.b32.cont [14/16] %v832, 128
        %955 = vxpose.xlu0.b32.cont [15/16] %v838, 128
        %956 = vxpose.xlu0.b32.end [16/16] %v842, 128
        %v957 = vpop.trf.xlu0
        %v958 = vpop.trf.xlu0
        %v959 = vpop.trf.xlu0
        %v960 = vpop.trf.xlu0
        %v961 = vpop.trf.xlu0
        %v962 = vpop.trf.xlu0
        %v963 = vpop.trf.xlu0
        %v964 = vpop.trf.xlu0
        %v965 = vpop.trf.xlu0
        %v966 = vpop.trf.xlu0
        %v967 = vpop.trf.xlu0
        %v968 = vpop.trf.xlu0
        %v969 = vpop.trf.xlu0
        %v970 = vpop.trf.xlu0
        %v971 = vpop.trf.xlu0
        %v972 = vpop.trf.xlu0
        %v973 = vmul.f32 %v766, 0.17677669
        %v974 = vmul.f32 %v770, 0.17677669
        %v975 = vmul.f32 %v776, 0.17677669
        %v976 = vmul.f32 %v780, 0.17677669
        %v977 = vmul.f32 %v786, 0.17677669
        %v978 = vmul.f32 %v790, 0.17677669
        %v979 = vmul.f32 %v796, 0.17677669
        %v980 = vmul.f32 %v800, 0.17677669
        %v981 = vmul.f32 %v806, 0.17677669
        %v982 = vmul.f32 %v810, 0.17677669
        %v983 = vmul.f32 %v816, 0.17677669
        %v984 = vmul.f32 %v820, 0.17677669
        %v985 = vmul.f32 %v826, 0.17677669
        %v986 = vmul.f32 %v830, 0.17677669
        %v987 = vmul.f32 %v836, 0.17677669
        %v988 = vmul.f32 %v840, 0.17677669
        %v989 = vpack.c.bf16 %v974, %v973
        %v990 = vpack.c.bf16 %v976, %v975
        %v991 = vpack.c.bf16 %v978, %v977
        %v992 = vpack.c.bf16 %v980, %v979
        %v993 = vpack.c.bf16 %v982, %v981
        %v994 = vpack.c.bf16 %v984, %v983
        %v995 = vpack.c.bf16 %v986, %v985
        %v996 = vpack.c.bf16 %v988, %v987
        %v1005 = vunpack.c.l.b16 %v989
        %v1006 = vunpack.c.h.b16 %v989
        %v1007 = vunpack.c.l.b16 %v990
        %v1008 = vunpack.c.h.b16 %v990
        %v1009 = vunpack.c.l.b16 %v991
        %v1010 = vunpack.c.h.b16 %v991
        %v1011 = vunpack.c.l.b16 %v992
        %v1012 = vunpack.c.h.b16 %v992
        %v1013 = vunpack.c.l.b16 %v993
        %v1014 = vunpack.c.h.b16 %v993
        %v1015 = vunpack.c.l.b16 %v994
        %v1016 = vunpack.c.h.b16 %v994
        %v1017 = vunpack.c.l.b16 %v995
        %v1018 = vunpack.c.h.b16 %v995
        %v1019 = vunpack.c.l.b16 %v996
        %v1020 = vunpack.c.h.b16 %v996
        %v1021 = vpack.c.b16 %v1005, %v1005
        %v1022 = vpack.c.b16 %v1006, %v1006
        %v1023 = vpack.c.b16 %v1007, %v1007
        %v1024 = vpack.c.b16 %v1008, %v1008
        %v1025 = vpack.c.b16 %v1009, %v1009
        %v1026 = vpack.c.b16 %v1010, %v1010
        %v1027 = vpack.c.b16 %v1011, %v1011
        %v1028 = vpack.c.b16 %v1012, %v1012
        %v1029 = vpack.c.b16 %v1013, %v1013
        %v1030 = vpack.c.b16 %v1014, %v1014
        %v1031 = vpack.c.b16 %v1015, %v1015
        %v1032 = vpack.c.b16 %v1016, %v1016
        %v1033 = vpack.c.b16 %v1017, %v1017
        %v1034 = vpack.c.b16 %v1018, %v1018
        %v1035 = vpack.c.b16 %v1019, %v1019
        %v1036 = vpack.c.b16 %v1020, %v1020
        %vm1053 = vcmask 257024
        %1054 = vst.msk [vmem:[%s306] sm:$0xf] %vm1053, %v1021
        %1055 = vst.msk [vmem:[%s306 + $0x4] sm:$0xf] %vm1053, %v1022
        %1056 = vst.msk [vmem:[%s306 + $0x8] sm:$0xf] %vm1053, %v1023
        %1057 = vst.msk [vmem:[%s306 + $0xc] sm:$0xf] %vm1053, %v1024
        %1058 = vst.msk [vmem:[%s306 + $0x10] sm:$0xf] %vm1053, %v1025
        %1059 = vst.msk [vmem:[%s306 + $0x14] sm:$0xf] %vm1053, %v1026
        %1060 = vst.msk [vmem:[%s306 + $0x18] sm:$0xf] %vm1053, %v1027
        %1061 = vst.msk [vmem:[%s306 + $0x1c] sm:$0xf] %vm1053, %v1028
        %1062 = vst.msk [vmem:[%s306 + $0x20] sm:$0xf] %vm1053, %v1029
        %1063 = vst.msk [vmem:[%s306 + $0x24] sm:$0xf] %vm1053, %v1030
        %1064 = vst.msk [vmem:[%s306 + $0x28] sm:$0xf] %vm1053, %v1031
        %1065 = vst.msk [vmem:[%s306 + $0x2c] sm:$0xf] %vm1053, %v1032
        %1066 = vst.msk [vmem:[%s306 + $0x30] sm:$0xf] %vm1053, %v1033
        %1067 = vst.msk [vmem:[%s306 + $0x34] sm:$0xf] %vm1053, %v1034
        %1068 = vst.msk [vmem:[%s306 + $0x38] sm:$0xf] %vm1053, %v1035
        %1069 = vst.msk [vmem:[%s306 + $0x3c] sm:$0xf] %vm1053, %v1036
        %v1070 = vpack.c.bf16 %v958, %v957
        %v1071 = vpack.c.bf16 %v960, %v959
        %v1074 = vunpack.c.l.b16 %v1070
        %v1075 = vunpack.c.h.b16 %v1070
        %v1076 = vunpack.c.l.b16 %v1071
        %v1077 = vunpack.c.h.b16 %v1071
        %v1078 = vpack.c.b16 %v1074, %v1074
        %v1079 = vpack.c.b16 %v1075, %v1075
        %v1080 = vpack.c.b16 %v1076, %v1076
        %v1081 = vpack.c.b16 %v1077, %v1077
        %1086 = vst [vmem:[%s313] sm:$0xf] %v1078
        %1087 = vst [vmem:[%s313 + $0x4] sm:$0xf] %v1079
        %1088 = vst [vmem:[%s313 + $0x8] sm:$0xf] %v1080
        %1089 = vst [vmem:[%s313 + $0xc] sm:$0xf] %v1081
        %v1090 = vpack.c.bf16 %v882, %v879
        %v1091 = vpack.c.bf16 %v890, %v887
        %v1092 = vpack.c.bf16 %v898, %v895
        %v1093 = vpack.c.bf16 %v906, %v903
        %v1094 = vpack.c.bf16 %v914, %v911
        %v1095 = vpack.c.bf16 %v922, %v919
        %v1096 = vpack.c.bf16 %v930, %v927
        %v1097 = vpack.c.bf16 %v938, %v935
        %v1106 = vunpack.c.l.b16 %v1090
        %v1107 = vunpack.c.h.b16 %v1090
        %v1108 = vunpack.c.l.b16 %v1091
        %v1109 = vunpack.c.h.b16 %v1091
        %v1110 = vunpack.c.l.b16 %v1092
        %v1111 = vunpack.c.h.b16 %v1092
        %v1112 = vunpack.c.l.b16 %v1093
        %v1113 = vunpack.c.h.b16 %v1093
        %v1114 = vunpack.c.l.b16 %v1094
        %v1115 = vunpack.c.h.b16 %v1094
        %v1116 = vunpack.c.l.b16 %v1095
        %v1117 = vunpack.c.h.b16 %v1095
        %v1118 = vunpack.c.l.b16 %v1096
        %v1119 = vunpack.c.h.b16 %v1096
        %v1120 = vunpack.c.l.b16 %v1097
        %v1121 = vunpack.c.h.b16 %v1097
        %v1122 = vpack.c.b16 %v1106, %v1106
        %v1123 = vpack.c.b16 %v1107, %v1107
        %v1124 = vpack.c.b16 %v1108, %v1108
        %v1125 = vpack.c.b16 %v1109, %v1109
        %v1126 = vpack.c.b16 %v1110, %v1110
        %v1127 = vpack.c.b16 %v1111, %v1111
        %v1128 = vpack.c.b16 %v1112, %v1112
        %v1129 = vpack.c.b16 %v1113, %v1113
        %v1130 = vpack.c.b16 %v1114, %v1114
        %v1131 = vpack.c.b16 %v1115, %v1115
        %v1132 = vpack.c.b16 %v1116, %v1116
        %v1133 = vpack.c.b16 %v1117, %v1117
        %v1134 = vpack.c.b16 %v1118, %v1118
        %v1135 = vpack.c.b16 %v1119, %v1119
        %v1136 = vpack.c.b16 %v1120, %v1120
        %v1137 = vpack.c.b16 %v1121, %v1121
        %1154 = vst.msk [vmem:[%s319] sm:$0xf] %vm1053, %v1122
        %1155 = vst.msk [vmem:[%s319 + $0x4] sm:$0xf] %vm1053, %v1123
        %1156 = vst.msk [vmem:[%s319 + $0x8] sm:$0xf] %vm1053, %v1124
        %1157 = vst.msk [vmem:[%s319 + $0xc] sm:$0xf] %vm1053, %v1125
        %1158 = vst.msk [vmem:[%s319 + $0x10] sm:$0xf] %vm1053, %v1126
        %1159 = vst.msk [vmem:[%s319 + $0x14] sm:$0xf] %vm1053, %v1127
        %1160 = vst.msk [vmem:[%s319 + $0x18] sm:$0xf] %vm1053, %v1128
        %1161 = vst.msk [vmem:[%s319 + $0x1c] sm:$0xf] %vm1053, %v1129
        %1162 = vst.msk [vmem:[%s319 + $0x20] sm:$0xf] %vm1053, %v1130
        %1163 = vst.msk [vmem:[%s319 + $0x24] sm:$0xf] %vm1053, %v1131
        %1164 = vst.msk [vmem:[%s319 + $0x28] sm:$0xf] %vm1053, %v1132
        %1165 = vst.msk [vmem:[%s319 + $0x2c] sm:$0xf] %vm1053, %v1133
        %1166 = vst.msk [vmem:[%s319 + $0x30] sm:$0xf] %vm1053, %v1134
        %1167 = vst.msk [vmem:[%s319 + $0x34] sm:$0xf] %vm1053, %v1135
        %1168 = vst.msk [vmem:[%s319 + $0x38] sm:$0xf] %vm1053, %v1136
        %1169 = vst.msk [vmem:[%s319 + $0x3c] sm:$0xf] %vm1053, %v1137
        %1170 = vrot.lane.b32.xlu0 %v1021, 96
        %v1171 = vpop.permute.xlu0 %1170
        %1172 = vrot.lane.b32.xlu0 %v1022, 96
        %v1173 = vpop.permute.xlu0 %1172
        %1174 = vrot.lane.b32.xlu0 %v1023, 96
        %v1175 = vpop.permute.xlu0 %1174
        %1176 = vrot.lane.b32.xlu0 %v1024, 96
        %v1177 = vpop.permute.xlu0 %1176
        %1178 = vrot.lane.b32.xlu0 %v1025, 96
        %v1179 = vpop.permute.xlu0 %1178
        %1180 = vrot.lane.b32.xlu0 %v1026, 96
        %v1181 = vpop.permute.xlu0 %1180
        %1182 = vrot.lane.b32.xlu0 %v1027, 96
        %v1183 = vpop.permute.xlu0 %1182
        %1184 = vrot.lane.b32.xlu0 %v1028, 96
        %v1185 = vpop.permute.xlu0 %1184
        %1186 = vrot.lane.b32.xlu0 %v1029, 96
        %v1187 = vpop.permute.xlu0 %1186
        %1188 = vrot.lane.b32.xlu0 %v1030, 96
        %v1189 = vpop.permute.xlu0 %1188
        %1190 = vrot.lane.b32.xlu0 %v1031, 96
        %v1191 = vpop.permute.xlu0 %1190
        %1192 = vrot.lane.b32.xlu0 %v1032, 96
        %v1193 = vpop.permute.xlu0 %1192
        %1194 = vrot.lane.b32.xlu0 %v1033, 96
        %v1195 = vpop.permute.xlu0 %1194
        %1196 = vrot.lane.b32.xlu0 %v1034, 96
        %v1197 = vpop.permute.xlu0 %1196
        %1198 = vrot.lane.b32.xlu0 %v1035, 96
        %v1199 = vpop.permute.xlu0 %1198
        %1200 = vrot.lane.b32.xlu0 %v1036, 96
        %v1201 = vpop.permute.xlu0 %1200
        %s1218 = scalar_lea.vmem %s306, 64 [#allocation7]
        %1219 = vst.msk [vmem:[%s1218] sm:$0xf] %vm1053, %v1171
        %1220 = vst.msk [vmem:[%s1218 + $0x4] sm:$0xf] %vm1053, %v1173
        %1221 = vst.msk [vmem:[%s1218 + $0x8] sm:$0xf] %vm1053, %v1175
        %1222 = vst.msk [vmem:[%s1218 + $0xc] sm:$0xf] %vm1053, %v1177
        %1223 = vst.msk [vmem:[%s1218 + $0x10] sm:$0xf] %vm1053, %v1179
        %1224 = vst.msk [vmem:[%s1218 + $0x14] sm:$0xf] %vm1053, %v1181
        %1225 = vst.msk [vmem:[%s1218 + $0x18] sm:$0xf] %vm1053, %v1183
        %1226 = vst.msk [vmem:[%s1218 + $0x1c] sm:$0xf] %vm1053, %v1185
        %1227 = vst.msk [vmem:[%s1218 + $0x20] sm:$0xf] %vm1053, %v1187
        %1228 = vst.msk [vmem:[%s1218 + $0x24] sm:$0xf] %vm1053, %v1189
        %1229 = vst.msk [vmem:[%s1218 + $0x28] sm:$0xf] %vm1053, %v1191
        %1230 = vst.msk [vmem:[%s1218 + $0x2c] sm:$0xf] %vm1053, %v1193
        %1231 = vst.msk [vmem:[%s1218 + $0x30] sm:$0xf] %vm1053, %v1195
        %1232 = vst.msk [vmem:[%s1218 + $0x34] sm:$0xf] %vm1053, %v1197
        %1233 = vst.msk [vmem:[%s1218 + $0x38] sm:$0xf] %vm1053, %v1199
        %1234 = vst.msk [vmem:[%s1218 + $0x3c] sm:$0xf] %vm1053, %v1201
        %v1235 = vpack.c.bf16 %v962, %v961
        %v1236 = vpack.c.bf16 %v964, %v963
        %v1239 = vunpack.c.l.b16 %v1235
        %v1240 = vunpack.c.h.b16 %v1235
        %v1241 = vunpack.c.l.b16 %v1236
        %v1242 = vunpack.c.h.b16 %v1236
        %v1243 = vpack.c.b16 %v1239, %v1239
        %v1244 = vpack.c.b16 %v1240, %v1240
        %v1245 = vpack.c.b16 %v1241, %v1241
        %v1246 = vpack.c.b16 %v1242, %v1242
        %s1251 = scalar_lea.vmem %s313, 16 [#allocation8]
        %1252 = vst [vmem:[%s1251] sm:$0xf] %v1243
        %1253 = vst [vmem:[%s1251 + $0x4] sm:$0xf] %v1244
        %1254 = vst [vmem:[%s1251 + $0x8] sm:$0xf] %v1245
        %1255 = vst [vmem:[%s1251 + $0xc] sm:$0xf] %v1246
        %1256 = vrot.lane.b32.xlu0 %v1122, 96
        %v1257 = vpop.permute.xlu0 %1256
        %1258 = vrot.lane.b32.xlu0 %v1123, 96
        %v1259 = vpop.permute.xlu0 %1258
        %1260 = vrot.lane.b32.xlu0 %v1124, 96
        %v1261 = vpop.permute.xlu0 %1260
        %1262 = vrot.lane.b32.xlu0 %v1125, 96
        %v1263 = vpop.permute.xlu0 %1262
        %1264 = vrot.lane.b32.xlu0 %v1126, 96
        %v1265 = vpop.permute.xlu0 %1264
        %1266 = vrot.lane.b32.xlu0 %v1127, 96
        %v1267 = vpop.permute.xlu0 %1266
        %1268 = vrot.lane.b32.xlu0 %v1128, 96
        %v1269 = vpop.permute.xlu0 %1268
        %1270 = vrot.lane.b32.xlu0 %v1129, 96
        %v1271 = vpop.permute.xlu0 %1270
        %1272 = vrot.lane.b32.xlu0 %v1130, 96
        %v1273 = vpop.permute.xlu0 %1272
        %1274 = vrot.lane.b32.xlu0 %v1131, 96
        %v1275 = vpop.permute.xlu0 %1274
        %1276 = vrot.lane.b32.xlu0 %v1132, 96
        %v1277 = vpop.permute.xlu0 %1276
        %1278 = vrot.lane.b32.xlu0 %v1133, 96
        %v1279 = vpop.permute.xlu0 %1278
        %1280 = vrot.lane.b32.xlu0 %v1134, 96
        %v1281 = vpop.permute.xlu0 %1280
        %1282 = vrot.lane.b32.xlu0 %v1135, 96
        %v1283 = vpop.permute.xlu0 %1282
        %1284 = vrot.lane.b32.xlu0 %v1136, 96
        %v1285 = vpop.permute.xlu0 %1284
        %1286 = vrot.lane.b32.xlu0 %v1137, 96
        %v1287 = vpop.permute.xlu0 %1286
        %s1304 = scalar_lea.vmem %s319, 64 [#allocation9]
        %1305 = vst.msk [vmem:[%s1304] sm:$0xf] %vm1053, %v1257
        %1306 = vst.msk [vmem:[%s1304 + $0x4] sm:$0xf] %vm1053, %v1259
        %1307 = vst.msk [vmem:[%s1304 + $0x8] sm:$0xf] %vm1053, %v1261
        %1308 = vst.msk [vmem:[%s1304 + $0xc] sm:$0xf] %vm1053, %v1263
        %1309 = vst.msk [vmem:[%s1304 + $0x10] sm:$0xf] %vm1053, %v1265
        %1310 = vst.msk [vmem:[%s1304 + $0x14] sm:$0xf] %vm1053, %v1267
        %1311 = vst.msk [vmem:[%s1304 + $0x18] sm:$0xf] %vm1053, %v1269
        %1312 = vst.msk [vmem:[%s1304 + $0x1c] sm:$0xf] %vm1053, %v1271
        %1313 = vst.msk [vmem:[%s1304 + $0x20] sm:$0xf] %vm1053, %v1273
        %1314 = vst.msk [vmem:[%s1304 + $0x24] sm:$0xf] %vm1053, %v1275
        %1315 = vst.msk [vmem:[%s1304 + $0x28] sm:$0xf] %vm1053, %v1277
        %1316 = vst.msk [vmem:[%s1304 + $0x2c] sm:$0xf] %vm1053, %v1279
        %1317 = vst.msk [vmem:[%s1304 + $0x30] sm:$0xf] %vm1053, %v1281
        %1318 = vst.msk [vmem:[%s1304 + $0x34] sm:$0xf] %vm1053, %v1283
        %1319 = vst.msk [vmem:[%s1304 + $0x38] sm:$0xf] %vm1053, %v1285
        %1320 = vst.msk [vmem:[%s1304 + $0x3c] sm:$0xf] %vm1053, %v1287
        %1321 = vrot.lane.b32.xlu0 %v1021, 64
        %v1322 = vpop.permute.xlu0 %1321
        %1323 = vrot.lane.b32.xlu0 %v1022, 64
        %v1324 = vpop.permute.xlu0 %1323
        %1325 = vrot.lane.b32.xlu0 %v1023, 64
        %v1326 = vpop.permute.xlu0 %1325
        %1327 = vrot.lane.b32.xlu0 %v1024, 64
        %v1328 = vpop.permute.xlu0 %1327
        %1329 = vrot.lane.b32.xlu0 %v1025, 64
        %v1330 = vpop.permute.xlu0 %1329
        %1331 = vrot.lane.b32.xlu0 %v1026, 64
        %v1332 = vpop.permute.xlu0 %1331
        %1333 = vrot.lane.b32.xlu0 %v1027, 64
        %v1334 = vpop.permute.xlu0 %1333
        %1335 = vrot.lane.b32.xlu0 %v1028, 64
        %v1336 = vpop.permute.xlu0 %1335
        %1337 = vrot.lane.b32.xlu0 %v1029, 64
        %v1338 = vpop.permute.xlu0 %1337
        %1339 = vrot.lane.b32.xlu0 %v1030, 64
        %v1340 = vpop.permute.xlu0 %1339
        %1341 = vrot.lane.b32.xlu0 %v1031, 64
        %v1342 = vpop.permute.xlu0 %1341
        %1343 = vrot.lane.b32.xlu0 %v1032, 64
        %v1344 = vpop.permute.xlu0 %1343
        %1345 = vrot.lane.b32.xlu0 %v1033, 64
        %v1346 = vpop.permute.xlu0 %1345
        %1347 = vrot.lane.b32.xlu0 %v1034, 64
        %v1348 = vpop.permute.xlu0 %1347
        %1349 = vrot.lane.b32.xlu0 %v1035, 64
        %v1350 = vpop.permute.xlu0 %1349
        %1351 = vrot.lane.b32.xlu0 %v1036, 64
        %v1352 = vpop.permute.xlu0 %1351
        %s1369 = scalar_lea.vmem %s306, 128 [#allocation7]
        %1370 = vst.msk [vmem:[%s1369] sm:$0xf] %vm1053, %v1322
        %1371 = vst.msk [vmem:[%s1369 + $0x4] sm:$0xf] %vm1053, %v1324
        %1372 = vst.msk [vmem:[%s1369 + $0x8] sm:$0xf] %vm1053, %v1326
        %1373 = vst.msk [vmem:[%s1369 + $0xc] sm:$0xf] %vm1053, %v1328
        %1374 = vst.msk [vmem:[%s1369 + $0x10] sm:$0xf] %vm1053, %v1330
        %1375 = vst.msk [vmem:[%s1369 + $0x14] sm:$0xf] %vm1053, %v1332
        %1376 = vst.msk [vmem:[%s1369 + $0x18] sm:$0xf] %vm1053, %v1334
        %1377 = vst.msk [vmem:[%s1369 + $0x1c] sm:$0xf] %vm1053, %v1336
        %1378 = vst.msk [vmem:[%s1369 + $0x20] sm:$0xf] %vm1053, %v1338
        %1379 = vst.msk [vmem:[%s1369 + $0x24] sm:$0xf] %vm1053, %v1340
        %1380 = vst.msk [vmem:[%s1369 + $0x28] sm:$0xf] %vm1053, %v1342
        %1381 = vst.msk [vmem:[%s1369 + $0x2c] sm:$0xf] %vm1053, %v1344
        %1382 = vst.msk [vmem:[%s1369 + $0x30] sm:$0xf] %vm1053, %v1346
        %1383 = vst.msk [vmem:[%s1369 + $0x34] sm:$0xf] %vm1053, %v1348
        %1384 = vst.msk [vmem:[%s1369 + $0x38] sm:$0xf] %vm1053, %v1350
        %1385 = vst.msk [vmem:[%s1369 + $0x3c] sm:$0xf] %vm1053, %v1352
        %v1386 = vpack.c.bf16 %v966, %v965
        %v1387 = vpack.c.bf16 %v968, %v967
        %v1390 = vunpack.c.l.b16 %v1386
        %v1391 = vunpack.c.h.b16 %v1386
        %v1392 = vunpack.c.l.b16 %v1387
        %v1393 = vunpack.c.h.b16 %v1387
        %v1394 = vpack.c.b16 %v1390, %v1390
        %v1395 = vpack.c.b16 %v1391, %v1391
        %v1396 = vpack.c.b16 %v1392, %v1392
        %v1397 = vpack.c.b16 %v1393, %v1393
        %s1402 = scalar_lea.vmem %s313, 32 [#allocation8]
        %1403 = vst [vmem:[%s1402] sm:$0xf] %v1394
        %1404 = vst [vmem:[%s1402 + $0x4] sm:$0xf] %v1395
        %1405 = vst [vmem:[%s1402 + $0x8] sm:$0xf] %v1396
        %1406 = vst [vmem:[%s1402 + $0xc] sm:$0xf] %v1397
        %1407 = vrot.lane.b32.xlu0 %v1122, 64
        %v1408 = vpop.permute.xlu0 %1407
        %1409 = vrot.lane.b32.xlu0 %v1123, 64
        %v1410 = vpop.permute.xlu0 %1409
        %1411 = vrot.lane.b32.xlu0 %v1124, 64
        %v1412 = vpop.permute.xlu0 %1411
        %1413 = vrot.lane.b32.xlu0 %v1125, 64
        %v1414 = vpop.permute.xlu0 %1413
        %1415 = vrot.lane.b32.xlu0 %v1126, 64
        %v1416 = vpop.permute.xlu0 %1415
        %1417 = vrot.lane.b32.xlu0 %v1127, 64
        %v1418 = vpop.permute.xlu0 %1417
        %1419 = vrot.lane.b32.xlu0 %v1128, 64
        %v1420 = vpop.permute.xlu0 %1419
        %1421 = vrot.lane.b32.xlu0 %v1129, 64
        %v1422 = vpop.permute.xlu0 %1421
        %1423 = vrot.lane.b32.xlu0 %v1130, 64
        %v1424 = vpop.permute.xlu0 %1423
        %1425 = vrot.lane.b32.xlu0 %v1131, 64
        %v1426 = vpop.permute.xlu0 %1425
        %1427 = vrot.lane.b32.xlu0 %v1132, 64
        %v1428 = vpop.permute.xlu0 %1427
        %1429 = vrot.lane.b32.xlu0 %v1133, 64
        %v1430 = vpop.permute.xlu0 %1429
        %1431 = vrot.lane.b32.xlu0 %v1134, 64
        %v1432 = vpop.permute.xlu0 %1431
        %1433 = vrot.lane.b32.xlu0 %v1135, 64
        %v1434 = vpop.permute.xlu0 %1433
        %1435 = vrot.lane.b32.xlu0 %v1136, 64
        %v1436 = vpop.permute.xlu0 %1435
        %1437 = vrot.lane.b32.xlu0 %v1137, 64
        %v1438 = vpop.permute.xlu0 %1437
        %s1455 = scalar_lea.vmem %s319, 128 [#allocation9]
        %1456 = vst.msk [vmem:[%s1455] sm:$0xf] %vm1053, %v1408
        %1457 = vst.msk [vmem:[%s1455 + $0x4] sm:$0xf] %vm1053, %v1410
        %1458 = vst.msk [vmem:[%s1455 + $0x8] sm:$0xf] %vm1053, %v1412
        %1459 = vst.msk [vmem:[%s1455 + $0xc] sm:$0xf] %vm1053, %v1414
        %1460 = vst.msk [vmem:[%s1455 + $0x10] sm:$0xf] %vm1053, %v1416
        %1461 = vst.msk [vmem:[%s1455 + $0x14] sm:$0xf] %vm1053, %v1418
        %1462 = vst.msk [vmem:[%s1455 + $0x18] sm:$0xf] %vm1053, %v1420
        %1463 = vst.msk [vmem:[%s1455 + $0x1c] sm:$0xf] %vm1053, %v1422
        %1464 = vst.msk [vmem:[%s1455 + $0x20] sm:$0xf] %vm1053, %v1424
        %1465 = vst.msk [vmem:[%s1455 + $0x24] sm:$0xf] %vm1053, %v1426
        %1466 = vst.msk [vmem:[%s1455 + $0x28] sm:$0xf] %vm1053, %v1428
        %1467 = vst.msk [vmem:[%s1455 + $0x2c] sm:$0xf] %vm1053, %v1430
        %1468 = vst.msk [vmem:[%s1455 + $0x30] sm:$0xf] %vm1053, %v1432
        %1469 = vst.msk [vmem:[%s1455 + $0x34] sm:$0xf] %vm1053, %v1434
        %1470 = vst.msk [vmem:[%s1455 + $0x38] sm:$0xf] %vm1053, %v1436
        %1471 = vst.msk [vmem:[%s1455 + $0x3c] sm:$0xf] %vm1053, %v1438
        %1472 = vrot.lane.b32.xlu0 %v1021, 32
        %v1473 = vpop.permute.xlu0 %1472
        %1474 = vrot.lane.b32.xlu0 %v1022, 32
        %v1475 = vpop.permute.xlu0 %1474
        %1476 = vrot.lane.b32.xlu0 %v1023, 32
        %v1477 = vpop.permute.xlu0 %1476
        %1478 = vrot.lane.b32.xlu0 %v1024, 32
        %v1479 = vpop.permute.xlu0 %1478
        %1480 = vrot.lane.b32.xlu0 %v1025, 32
        %v1481 = vpop.permute.xlu0 %1480
        %1482 = vrot.lane.b32.xlu0 %v1026, 32
        %v1483 = vpop.permute.xlu0 %1482
        %1484 = vrot.lane.b32.xlu0 %v1027, 32
        %v1485 = vpop.permute.xlu0 %1484
        %1486 = vrot.lane.b32.xlu0 %v1028, 32
        %v1487 = vpop.permute.xlu0 %1486
        %1488 = vrot.lane.b32.xlu0 %v1029, 32
        %v1489 = vpop.permute.xlu0 %1488
        %1490 = vrot.lane.b32.xlu0 %v1030, 32
        %v1491 = vpop.permute.xlu0 %1490
        %1492 = vrot.lane.b32.xlu0 %v1031, 32
        %v1493 = vpop.permute.xlu0 %1492
        %1494 = vrot.lane.b32.xlu0 %v1032, 32
        %v1495 = vpop.permute.xlu0 %1494
        %1496 = vrot.lane.b32.xlu0 %v1033, 32
        %v1497 = vpop.permute.xlu0 %1496
        %1498 = vrot.lane.b32.xlu0 %v1034, 32
        %v1499 = vpop.permute.xlu0 %1498
        %1500 = vrot.lane.b32.xlu0 %v1035, 32
        %v1501 = vpop.permute.xlu0 %1500
        %1502 = vrot.lane.b32.xlu0 %v1036, 32
        %v1503 = vpop.permute.xlu0 %1502
        %s1520 = scalar_lea.vmem %s306, 192 [#allocation7]
        %1521 = vst.msk [vmem:[%s1520] sm:$0xf] %vm1053, %v1473
        %1522 = vst.msk [vmem:[%s1520 + $0x4] sm:$0xf] %vm1053, %v1475
        %1523 = vst.msk [vmem:[%s1520 + $0x8] sm:$0xf] %vm1053, %v1477
        %1524 = vst.msk [vmem:[%s1520 + $0xc] sm:$0xf] %vm1053, %v1479
        %1525 = vst.msk [vmem:[%s1520 + $0x10] sm:$0xf] %vm1053, %v1481
        %1526 = vst.msk [vmem:[%s1520 + $0x14] sm:$0xf] %vm1053, %v1483
        %1527 = vst.msk [vmem:[%s1520 + $0x18] sm:$0xf] %vm1053, %v1485
        %1528 = vst.msk [vmem:[%s1520 + $0x1c] sm:$0xf] %vm1053, %v1487
        %1529 = vst.msk [vmem:[%s1520 + $0x20] sm:$0xf] %vm1053, %v1489
        %1530 = vst.msk [vmem:[%s1520 + $0x24] sm:$0xf] %vm1053, %v1491
        %1531 = vst.msk [vmem:[%s1520 + $0x28] sm:$0xf] %vm1053, %v1493
        %1532 = vst.msk [vmem:[%s1520 + $0x2c] sm:$0xf] %vm1053, %v1495
        %1533 = vst.msk [vmem:[%s1520 + $0x30] sm:$0xf] %vm1053, %v1497
        %1534 = vst.msk [vmem:[%s1520 + $0x34] sm:$0xf] %vm1053, %v1499
        %1535 = vst.msk [vmem:[%s1520 + $0x38] sm:$0xf] %vm1053, %v1501
        %1536 = vst.msk [vmem:[%s1520 + $0x3c] sm:$0xf] %vm1053, %v1503
        %v1537 = vpack.c.bf16 %v970, %v969
        %v1538 = vpack.c.bf16 %v972, %v971
        %v1541 = vunpack.c.l.b16 %v1537
        %v1542 = vunpack.c.h.b16 %v1537
        %v1543 = vunpack.c.l.b16 %v1538
        %v1544 = vunpack.c.h.b16 %v1538
        %v1545 = vpack.c.b16 %v1541, %v1541
        %v1546 = vpack.c.b16 %v1542, %v1542
        %v1547 = vpack.c.b16 %v1543, %v1543
        %v1548 = vpack.c.b16 %v1544, %v1544
        %s1553 = scalar_lea.vmem %s313, 48 [#allocation8]
        %1554 = vst [vmem:[%s1553] sm:$0xf] %v1545
        %1555 = vst [vmem:[%s1553 + $0x4] sm:$0xf] %v1546
        %1556 = vst [vmem:[%s1553 + $0x8] sm:$0xf] %v1547
        %1557 = vst [vmem:[%s1553 + $0xc] sm:$0xf] %v1548
        %1558 = vrot.lane.b32.xlu0 %v1122, 32
        %v1559 = vpop.permute.xlu0 %1558
        %1560 = vrot.lane.b32.xlu0 %v1123, 32
        %v1561 = vpop.permute.xlu0 %1560
        %1562 = vrot.lane.b32.xlu0 %v1124, 32
        %v1563 = vpop.permute.xlu0 %1562
        %1564 = vrot.lane.b32.xlu0 %v1125, 32
        %v1565 = vpop.permute.xlu0 %1564
        %1566 = vrot.lane.b32.xlu0 %v1126, 32
        %v1567 = vpop.permute.xlu0 %1566
        %1568 = vrot.lane.b32.xlu0 %v1127, 32
        %v1569 = vpop.permute.xlu0 %1568
        %1570 = vrot.lane.b32.xlu0 %v1128, 32
        %v1571 = vpop.permute.xlu0 %1570
        %1572 = vrot.lane.b32.xlu0 %v1129, 32
        %v1573 = vpop.permute.xlu0 %1572
        %1574 = vrot.lane.b32.xlu0 %v1130, 32
        %v1575 = vpop.permute.xlu0 %1574
        %1576 = vrot.lane.b32.xlu0 %v1131, 32
        %v1577 = vpop.permute.xlu0 %1576
        %1578 = vrot.lane.b32.xlu0 %v1132, 32
        %v1579 = vpop.permute.xlu0 %1578
        %1580 = vrot.lane.b32.xlu0 %v1133, 32
        %v1581 = vpop.permute.xlu0 %1580
        %1582 = vrot.lane.b32.xlu0 %v1134, 32
        %v1583 = vpop.permute.xlu0 %1582
        %1584 = vrot.lane.b32.xlu0 %v1135, 32
        %v1585 = vpop.permute.xlu0 %1584
        %1586 = vrot.lane.b32.xlu0 %v1136, 32
        %v1587 = vpop.permute.xlu0 %1586
        %1588 = vrot.lane.b32.xlu0 %v1137, 32
        %v1589 = vpop.permute.xlu0 %1588
        %s1606 = scalar_lea.vmem %s319, 192 [#allocation9]
        %1607 = vst.msk [vmem:[%s1606] sm:$0xf] %vm1053, %v1559
        %1608 = vst.msk [vmem:[%s1606 + $0x4] sm:$0xf] %vm1053, %v1561
        %1609 = vst.msk [vmem:[%s1606 + $0x8] sm:$0xf] %vm1053, %v1563
        %1610 = vst.msk [vmem:[%s1606 + $0xc] sm:$0xf] %vm1053, %v1565
        %1611 = vst.msk [vmem:[%s1606 + $0x10] sm:$0xf] %vm1053, %v1567
        %1612 = vst.msk [vmem:[%s1606 + $0x14] sm:$0xf] %vm1053, %v1569
        %1613 = vst.msk [vmem:[%s1606 + $0x18] sm:$0xf] %vm1053, %v1571
        %1614 = vst.msk [vmem:[%s1606 + $0x1c] sm:$0xf] %vm1053, %v1573
        %1615 = vst.msk [vmem:[%s1606 + $0x20] sm:$0xf] %vm1053, %v1575
        %1616 = vst.msk [vmem:[%s1606 + $0x24] sm:$0xf] %vm1053, %v1577
        %1617 = vst.msk [vmem:[%s1606 + $0x28] sm:$0xf] %vm1053, %v1579
        %1618 = vst.msk [vmem:[%s1606 + $0x2c] sm:$0xf] %vm1053, %v1581
        %1619 = vst.msk [vmem:[%s1606 + $0x30] sm:$0xf] %vm1053, %v1583
        %1620 = vst.msk [vmem:[%s1606 + $0x34] sm:$0xf] %vm1053, %v1585
        %1621 = vst.msk [vmem:[%s1606 + $0x38] sm:$0xf] %vm1053, %v1587
        %1622 = vst.msk [vmem:[%s1606 + $0x3c] sm:$0xf] %vm1053, %v1589
        %s1623 = sand.u32 %s138, 1
        %s1624 = sand.u32 %s138, 1
        %s1625 = smul.addr %s1624, 256
        %s1626 = scalar_lea.vmem [#allocation7], %s1625
        %s1627 = sand.u32 %s166, 1
        %s1628 = scalar_lea.sflag [#allocation4], %s1627
        %s1629 = sand.u32 %s166, 1
        %s1630 = smul.addr %s1629, 64
        %s1631 = scalar_lea.vmem [#allocation8], %s1630
        %s1632 = sand.u32 %s194, 1
        %s1633 = sand.u32 %s194, 1
        %s1634 = smul.addr %s1633, 256
        %s1635 = scalar_lea.vmem [#allocation9], %s1634
        // Predicated region
        $region45: #{tpu_custom_call.1} parent=35 // pred_check
          %p1636 = pneg %p148
        $region46: #{tpu_custom_call.1} parent=35 // pred_check_branch
          %1638 = sbr.rel (%p1636) target = $region48
        $region47: #{tpu_custom_call.1} parent=35 // pred_region
          %s1639 = smul.u32 16, %s30
          %s1640 = smul.addr %s29, 128
          %s1641 = sadd.s32 %s1639, %s1640
          %s1642 = smul.addr %s1641, 4
          %s1643 = scalar_lea.vmem %s4, %s1642
          // Predicated region
          $region49: #{tpu_custom_call.1} parent=47 // pred_check
            _
          $region50: #{tpu_custom_call.1} parent=47 // pred_check_branch
            %1645 = sbr.rel (0) target = $region52
          $region51: #{tpu_custom_call.1} parent=47 // pred_region
            // Predicated region
            $region53: #{tpu_custom_call.1} parent=51 // pred_check
              _
            $region54: #{tpu_custom_call.1} parent=51 // pred_check_branch
              %1647 = sbr.rel target = $region56
            $region55: #{tpu_custom_call.1} parent=51 // pred_region
              // Predicated region
              $region68: #{tpu_custom_call.1} parent=55 // pred_check
                _
              $region69: #{tpu_custom_call.1} parent=55 // pred_check_branch
                %1789 = sbr.rel (0) target = $region71
              $region70: #{tpu_custom_call.1} parent=55 // pred_region
                loop: start=0, step=1, limit=1
                $region72: #{tpu_custom_call.1} parent=70 // loop_pre_header
                  _
                $region73: #{tpu_custom_call.1} parent=70 // loop_header
                  %s1791 = sphi 0, %s1795
                  %p1792 = scmp.ge.s32.totalorder %s1791, 1
                  %s1796 = sphi %s1626, %s1626
                  %s1797 = sphi %s1643, %s1643
                $region74: #{tpu_custom_call.1} parent=70 // loop_header_branch
                  %1794 = sbr.rel (%p1792) target = $region78
                $region75: #{tpu_custom_call.1} parent=70 // loop_body
                  _
                $region76: #{tpu_custom_call.1} parent=70 // loop_footer
                  %s1795 = sadd.s32 1, %s1791
                $region77: #{tpu_custom_call.1} parent=70 // loop_footer_branch
                  %1790 = sbr.rel target = $region73
                $region78: #{tpu_custom_call.1} parent=70 // loop_exit
                  _
                %s1799 = ssub.s32 16, 1
                loop: start=0, step=1, limit=1
                $region79: #{tpu_custom_call.1} parent=70 // loop_pre_header
                  _
                $region80: #{tpu_custom_call.1} parent=70 // loop_header
                  %s1801 = sphi 0, %s1805
                  %p1802 = scmp.ge.s32.totalorder %s1801, 1
                  %s1806 = sphi %s1626, %s1626
                  %s1807 = sphi %s1643, %s1643
                $region81: #{tpu_custom_call.1} parent=70 // loop_header_branch
                  %1804 = sbr.rel (%p1802) target = $region85
                $region82: #{tpu_custom_call.1} parent=70 // loop_body
                  %v1808 = vld [vmem:[%s1806] sm:%s1799]
                  %1809 = vst [vmem:[%s1807] sm:%s1799] %v1808
                  %v1810 = vld [vmem:[%s1806 + $0x4] sm:%s1799]
                  %1811 = vst [vmem:[%s1807 + $0x4] sm:%s1799] %v1810
                  %v1812 = vld [vmem:[%s1806 + $0x8] sm:%s1799]
                  %1813 = vst [vmem:[%s1807 + $0x8] sm:%s1799] %v1812
                  %v1814 = vld [vmem:[%s1806 + $0xc] sm:%s1799]
                  %1815 = vst [vmem:[%s1807 + $0xc] sm:%s1799] %v1814
                  %v1816 = vld [vmem:[%s1806 + $0x10] sm:%s1799]
                  %1817 = vst [vmem:[%s1807 + $0x10] sm:%s1799] %v1816
                  %v1818 = vld [vmem:[%s1806 + $0x14] sm:%s1799]
                  %1819 = vst [vmem:[%s1807 + $0x14] sm:%s1799] %v1818
                  %v1820 = vld [vmem:[%s1806 + $0x18] sm:%s1799]
                  %1821 = vst [vmem:[%s1807 + $0x18] sm:%s1799] %v1820
                  %v1822 = vld [vmem:[%s1806 + $0x1c] sm:%s1799]
                  %1823 = vst [vmem:[%s1807 + $0x1c] sm:%s1799] %v1822
                  %v1824 = vld [vmem:[%s1806 + $0x20] sm:%s1799]
                  %1825 = vst [vmem:[%s1807 + $0x20] sm:%s1799] %v1824
                  %v1826 = vld [vmem:[%s1806 + $0x24] sm:%s1799]
                  %1827 = vst [vmem:[%s1807 + $0x24] sm:%s1799] %v1826
                  %v1828 = vld [vmem:[%s1806 + $0x28] sm:%s1799]
                  %1829 = vst [vmem:[%s1807 + $0x28] sm:%s1799] %v1828
                  %v1830 = vld [vmem:[%s1806 + $0x2c] sm:%s1799]
                  %1831 = vst [vmem:[%s1807 + $0x2c] sm:%s1799] %v1830
                  %v1832 = vld [vmem:[%s1806 + $0x30] sm:%s1799]
                  %1833 = vst [vmem:[%s1807 + $0x30] sm:%s1799] %v1832
                  %v1834 = vld [vmem:[%s1806 + $0x34] sm:%s1799]
                  %1835 = vst [vmem:[%s1807 + $0x34] sm:%s1799] %v1834
                  %v1836 = vld [vmem:[%s1806 + $0x38] sm:%s1799]
                  %1837 = vst [vmem:[%s1807 + $0x38] sm:%s1799] %v1836
                  %v1838 = vld [vmem:[%s1806 + $0x3c] sm:%s1799]
                  %1839 = vst [vmem:[%s1807 + $0x3c] sm:%s1799] %v1838
                  %v1840 = vld [vmem:[%s1806 + $0x40] sm:%s1799]
                  %1841 = vst [vmem:[%s1807 + $0x80] sm:%s1799] %v1840
                  %v1842 = vld [vmem:[%s1806 + $0x44] sm:%s1799]
                  %1843 = vst [vmem:[%s1807 + $0x84] sm:%s1799] %v1842
                  %v1844 = vld [vmem:[%s1806 + $0x48] sm:%s1799]
                  %1845 = vst [vmem:[%s1807 + $0x88] sm:%s1799] %v1844
                  %v1846 = vld [vmem:[%s1806 + $0x4c] sm:%s1799]
                  %1847 = vst [vmem:[%s1807 + $0x8c] sm:%s1799] %v1846
                  %v1848 = vld [vmem:[%s1806 + $0x50] sm:%s1799]
                  %1849 = vst [vmem:[%s1807 + $0x90] sm:%s1799] %v1848
                  %v1850 = vld [vmem:[%s1806 + $0x54] sm:%s1799]
                  %1851 = vst [vmem:[%s1807 + $0x94] sm:%s1799] %v1850
                  %v1852 = vld [vmem:[%s1806 + $0x58] sm:%s1799]
                  %1853 = vst [vmem:[%s1807 + $0x98] sm:%s1799] %v1852
                  %v1854 = vld [vmem:[%s1806 + $0x5c] sm:%s1799]
                  %1855 = vst [vmem:[%s1807 + $0x9c] sm:%s1799] %v1854
                  %v1856 = vld [vmem:[%s1806 + $0x60] sm:%s1799]
                  %1857 = vst [vmem:[%s1807 + $0xa0] sm:%s1799] %v1856
                  %v1858 = vld [vmem:[%s1806 + $0x64] sm:%s1799]
                  %1859 = vst [vmem:[%s1807 + $0xa4] sm:%s1799] %v1858
                  %v1860 = vld [vmem:[%s1806 + $0x68] sm:%s1799]
                  %1861 = vst [vmem:[%s1807 + $0xa8] sm:%s1799] %v1860
                  %v1862 = vld [vmem:[%s1806 + $0x6c] sm:%s1799]
                  %1863 = vst [vmem:[%s1807 + $0xac] sm:%s1799] %v1862
                  %v1864 = vld [vmem:[%s1806 + $0x70] sm:%s1799]
                  %1865 = vst [vmem:[%s1807 + $0xb0] sm:%s1799] %v1864
                  %v1866 = vld [vmem:[%s1806 + $0x74] sm:%s1799]
                  %1867 = vst [vmem:[%s1807 + $0xb4] sm:%s1799] %v1866
                  %v1868 = vld [vmem:[%s1806 + $0x78] sm:%s1799]
                  %1869 = vst [vmem:[%s1807 + $0xb8] sm:%s1799] %v1868
                  %v1870 = vld [vmem:[%s1806 + $0x7c] sm:%s1799]
                  %1871 = vst [vmem:[%s1807 + $0xbc] sm:%s1799] %v1870
                  %v1872 = vld [vmem:[%s1806 + $0x80] sm:%s1799]
                  %1873 = vst [vmem:[%s1807 + $0x100] sm:%s1799] %v1872
                  %v1874 = vld [vmem:[%s1806 + $0x84] sm:%s1799]
                  %1875 = vst [vmem:[%s1807 + $0x104] sm:%s1799] %v1874
                  %v1876 = vld [vmem:[%s1806 + $0x88] sm:%s1799]
                  %1877 = vst [vmem:[%s1807 + $0x108] sm:%s1799] %v1876
                  %v1878 = vld [vmem:[%s1806 + $0x8c] sm:%s1799]
                  %1879 = vst [vmem:[%s1807 + $0x10c] sm:%s1799] %v1878
                  %v1880 = vld [vmem:[%s1806 + $0x90] sm:%s1799]
                  %1881 = vst [vmem:[%s1807 + $0x110] sm:%s1799] %v1880
                  %v1882 = vld [vmem:[%s1806 + $0x94] sm:%s1799]
                  %1883 = vst [vmem:[%s1807 + $0x114] sm:%s1799] %v1882
                  %v1884 = vld [vmem:[%s1806 + $0x98] sm:%s1799]
                  %1885 = vst [vmem:[%s1807 + $0x118] sm:%s1799] %v1884
                  %v1886 = vld [vmem:[%s1806 + $0x9c] sm:%s1799]
                  %1887 = vst [vmem:[%s1807 + $0x11c] sm:%s1799] %v1886
                  %v1888 = vld [vmem:[%s1806 + $0xa0] sm:%s1799]
                  %1889 = vst [vmem:[%s1807 + $0x120] sm:%s1799] %v1888
                  %v1890 = vld [vmem:[%s1806 + $0xa4] sm:%s1799]
                  %1891 = vst [vmem:[%s1807 + $0x124] sm:%s1799] %v1890
                  %v1892 = vld [vmem:[%s1806 + $0xa8] sm:%s1799]
                  %1893 = vst [vmem:[%s1807 + $0x128] sm:%s1799] %v1892
                  %v1894 = vld [vmem:[%s1806 + $0xac] sm:%s1799]
                  %1895 = vst [vmem:[%s1807 + $0x12c] sm:%s1799] %v1894
                  %v1896 = vld [vmem:[%s1806 + $0xb0] sm:%s1799]
                  %1897 = vst [vmem:[%s1807 + $0x130] sm:%s1799] %v1896
                  %v1898 = vld [vmem:[%s1806 + $0xb4] sm:%s1799]
                  %1899 = vst [vmem:[%s1807 + $0x134] sm:%s1799] %v1898
                  %v1900 = vld [vmem:[%s1806 + $0xb8] sm:%s1799]
                  %1901 = vst [vmem:[%s1807 + $0x138] sm:%s1799] %v1900
                  %v1902 = vld [vmem:[%s1806 + $0xbc] sm:%s1799]
                  %1903 = vst [vmem:[%s1807 + $0x13c] sm:%s1799] %v1902
                  %v1904 = vld [vmem:[%s1806 + $0xc0] sm:%s1799]
                  %1905 = vst [vmem:[%s1807 + $0x180] sm:%s1799] %v1904
                  %v1906 = vld [vmem:[%s1806 + $0xc4] sm:%s1799]
                  %1907 = vst [vmem:[%s1807 + $0x184] sm:%s1799] %v1906
                  %v1908 = vld [vmem:[%s1806 + $0xc8] sm:%s1799]
                  %1909 = vst [vmem:[%s1807 + $0x188] sm:%s1799] %v1908
                  %v1910 = vld [vmem:[%s1806 + $0xcc] sm:%s1799]
                  %1911 = vst [vmem:[%s1807 + $0x18c] sm:%s1799] %v1910
                  %v1912 = vld [vmem:[%s1806 + $0xd0] sm:%s1799]
                  %1913 = vst [vmem:[%s1807 + $0x190] sm:%s1799] %v1912
                  %v1914 = vld [vmem:[%s1806 + $0xd4] sm:%s1799]
                  %1915 = vst [vmem:[%s1807 + $0x194] sm:%s1799] %v1914
                  %v1916 = vld [vmem:[%s1806 + $0xd8] sm:%s1799]
                  %1917 = vst [vmem:[%s1807 + $0x198] sm:%s1799] %v1916
                  %v1918 = vld [vmem:[%s1806 + $0xdc] sm:%s1799]
                  %1919 = vst [vmem:[%s1807 + $0x19c] sm:%s1799] %v1918
                  %v1920 = vld [vmem:[%s1806 + $0xe0] sm:%s1799]
                  %1921 = vst [vmem:[%s1807 + $0x1a0] sm:%s1799] %v1920
                  %v1922 = vld [vmem:[%s1806 + $0xe4] sm:%s1799]
                  %1923 = vst [vmem:[%s1807 + $0x1a4] sm:%s1799] %v1922
                  %v1924 = vld [vmem:[%s1806 + $0xe8] sm:%s1799]
                  %1925 = vst [vmem:[%s1807 + $0x1a8] sm:%s1799] %v1924
                  %v1926 = vld [vmem:[%s1806 + $0xec] sm:%s1799]
                  %1927 = vst [vmem:[%s1807 + $0x1ac] sm:%s1799] %v1926
                  %v1928 = vld [vmem:[%s1806 + $0xf0] sm:%s1799]
                  %1929 = vst [vmem:[%s1807 + $0x1b0] sm:%s1799] %v1928
                  %v1930 = vld [vmem:[%s1806 + $0xf4] sm:%s1799]
                  %1931 = vst [vmem:[%s1807 + $0x1b4] sm:%s1799] %v1930
                  %v1932 = vld [vmem:[%s1806 + $0xf8] sm:%s1799]
                  %1933 = vst [vmem:[%s1807 + $0x1b8] sm:%s1799] %v1932
                  %v1934 = vld [vmem:[%s1806 + $0xfc] sm:%s1799]
                  %1935 = vst [vmem:[%s1807 + $0x1bc] sm:%s1799] %v1934
                $region83: #{tpu_custom_call.1} parent=70 // loop_footer
                  %s1805 = sadd.s32 1, %s1801
                $region84: #{tpu_custom_call.1} parent=70 // loop_footer_branch
                  %1800 = sbr.rel target = $region80
                $region85: #{tpu_custom_call.1} parent=70 // loop_exit
                  _
              $region71: #{tpu_custom_call.1} parent=55 // pred_fallthru
                _
            $region56: #{tpu_custom_call.1} parent=51 // pred_fallthru
              _
            // Predicated region
            $region57: #{tpu_custom_call.1} parent=51 // pred_check
              _
            $region58: #{tpu_custom_call.1} parent=51 // pred_check_branch
              %1649 = sbr.rel (0) target = $region60
            $region59: #{tpu_custom_call.1} parent=51 // pred_region
              %s1651 = ssub.s32 16, 1
              loop: start=0, step=1, limit=1
              $region61: #{tpu_custom_call.1} parent=59 // loop_pre_header
                _
              $region62: #{tpu_custom_call.1} parent=59 // loop_header
                %s1653 = sphi 0, %s1657
                %p1654 = scmp.ge.s32.totalorder %s1653, 1
                %s1658 = sphi %s1626, %s1626
                %s1659 = sphi %s1643, %s1643
              $region63: #{tpu_custom_call.1} parent=59 // loop_header_branch
                %1656 = sbr.rel (%p1654) target = $region67
              $region64: #{tpu_custom_call.1} parent=59 // loop_body
                %v1660 = vld [vmem:[%s1658] sm:%s1651]
                %1661 = vst [vmem:[%s1659] sm:%s1651] %v1660
                %v1662 = vld [vmem:[%s1658 + $0x4] sm:%s1651]
                %1663 = vst [vmem:[%s1659 + $0x4] sm:%s1651] %v1662
                %v1664 = vld [vmem:[%s1658 + $0x8] sm:%s1651]
                %1665 = vst [vmem:[%s1659 + $0x8] sm:%s1651] %v1664
                %v1666 = vld [vmem:[%s1658 + $0xc] sm:%s1651]
                %1667 = vst [vmem:[%s1659 + $0xc] sm:%s1651] %v1666
                %v1668 = vld [vmem:[%s1658 + $0x10] sm:%s1651]
                %1669 = vst [vmem:[%s1659 + $0x10] sm:%s1651] %v1668
                %v1670 = vld [vmem:[%s1658 + $0x14] sm:%s1651]
                %1671 = vst [vmem:[%s1659 + $0x14] sm:%s1651] %v1670
                %v1672 = vld [vmem:[%s1658 + $0x18] sm:%s1651]
                %1673 = vst [vmem:[%s1659 + $0x18] sm:%s1651] %v1672
                %v1674 = vld [vmem:[%s1658 + $0x1c] sm:%s1651]
                %1675 = vst [vmem:[%s1659 + $0x1c] sm:%s1651] %v1674
                %v1676 = vld [vmem:[%s1658 + $0x20] sm:%s1651]
                %1677 = vst [vmem:[%s1659 + $0x20] sm:%s1651] %v1676
                %v1678 = vld [vmem:[%s1658 + $0x24] sm:%s1651]
                %1679 = vst [vmem:[%s1659 + $0x24] sm:%s1651] %v1678
                %v1680 = vld [vmem:[%s1658 + $0x28] sm:%s1651]
                %1681 = vst [vmem:[%s1659 + $0x28] sm:%s1651] %v1680
                %v1682 = vld [vmem:[%s1658 + $0x2c] sm:%s1651]
                %1683 = vst [vmem:[%s1659 + $0x2c] sm:%s1651] %v1682
                %v1684 = vld [vmem:[%s1658 + $0x30] sm:%s1651]
                %1685 = vst [vmem:[%s1659 + $0x30] sm:%s1651] %v1684
                %v1686 = vld [vmem:[%s1658 + $0x34] sm:%s1651]
                %1687 = vst [vmem:[%s1659 + $0x34] sm:%s1651] %v1686
                %v1688 = vld [vmem:[%s1658 + $0x38] sm:%s1651]
                %1689 = vst [vmem:[%s1659 + $0x38] sm:%s1651] %v1688
                %v1690 = vld [vmem:[%s1658 + $0x3c] sm:%s1651]
                %1691 = vst [vmem:[%s1659 + $0x3c] sm:%s1651] %v1690
                %v1692 = vld [vmem:[%s1658 + $0x40] sm:%s1651]
                %1693 = vst [vmem:[%s1659 + $0x80] sm:%s1651] %v1692
                %v1694 = vld [vmem:[%s1658 + $0x44] sm:%s1651]
                %1695 = vst [vmem:[%s1659 + $0x84] sm:%s1651] %v1694
                %v1696 = vld [vmem:[%s1658 + $0x48] sm:%s1651]
                %1697 = vst [vmem:[%s1659 + $0x88] sm:%s1651] %v1696
                %v1698 = vld [vmem:[%s1658 + $0x4c] sm:%s1651]
                %1699 = vst [vmem:[%s1659 + $0x8c] sm:%s1651] %v1698
                %v1700 = vld [vmem:[%s1658 + $0x50] sm:%s1651]
                %1701 = vst [vmem:[%s1659 + $0x90] sm:%s1651] %v1700
                %v1702 = vld [vmem:[%s1658 + $0x54] sm:%s1651]
                %1703 = vst [vmem:[%s1659 + $0x94] sm:%s1651] %v1702
                %v1704 = vld [vmem:[%s1658 + $0x58] sm:%s1651]
                %1705 = vst [vmem:[%s1659 + $0x98] sm:%s1651] %v1704
                %v1706 = vld [vmem:[%s1658 + $0x5c] sm:%s1651]
                %1707 = vst [vmem:[%s1659 + $0x9c] sm:%s1651] %v1706
                %v1708 = vld [vmem:[%s1658 + $0x60] sm:%s1651]
                %1709 = vst [vmem:[%s1659 + $0xa0] sm:%s1651] %v1708
                %v1710 = vld [vmem:[%s1658 + $0x64] sm:%s1651]
                %1711 = vst [vmem:[%s1659 + $0xa4] sm:%s1651] %v1710
                %v1712 = vld [vmem:[%s1658 + $0x68] sm:%s1651]
                %1713 = vst [vmem:[%s1659 + $0xa8] sm:%s1651] %v1712
                %v1714 = vld [vmem:[%s1658 + $0x6c] sm:%s1651]
                %1715 = vst [vmem:[%s1659 + $0xac] sm:%s1651] %v1714
                %v1716 = vld [vmem:[%s1658 + $0x70] sm:%s1651]
                %1717 = vst [vmem:[%s1659 + $0xb0] sm:%s1651] %v1716
                %v1718 = vld [vmem:[%s1658 + $0x74] sm:%s1651]
                %1719 = vst [vmem:[%s1659 + $0xb4] sm:%s1651] %v1718
                %v1720 = vld [vmem:[%s1658 + $0x78] sm:%s1651]
                %1721 = vst [vmem:[%s1659 + $0xb8] sm:%s1651] %v1720
                %v1722 = vld [vmem:[%s1658 + $0x7c] sm:%s1651]
                %1723 = vst [vmem:[%s1659 + $0xbc] sm:%s1651] %v1722
                %v1724 = vld [vmem:[%s1658 + $0x80] sm:%s1651]
                %1725 = vst [vmem:[%s1659 + $0x100] sm:%s1651] %v1724
                %v1726 = vld [vmem:[%s1658 + $0x84] sm:%s1651]
                %1727 = vst [vmem:[%s1659 + $0x104] sm:%s1651] %v1726
                %v1728 = vld [vmem:[%s1658 + $0x88] sm:%s1651]
                %1729 = vst [vmem:[%s1659 + $0x108] sm:%s1651] %v1728
                %v1730 = vld [vmem:[%s1658 + $0x8c] sm:%s1651]
                %1731 = vst [vmem:[%s1659 + $0x10c] sm:%s1651] %v1730
                %v1732 = vld [vmem:[%s1658 + $0x90] sm:%s1651]
                %1733 = vst [vmem:[%s1659 + $0x110] sm:%s1651] %v1732
                %v1734 = vld [vmem:[%s1658 + $0x94] sm:%s1651]
                %1735 = vst [vmem:[%s1659 + $0x114] sm:%s1651] %v1734
                %v1736 = vld [vmem:[%s1658 + $0x98] sm:%s1651]
                %1737 = vst [vmem:[%s1659 + $0x118] sm:%s1651] %v1736
                %v1738 = vld [vmem:[%s1658 + $0x9c] sm:%s1651]
                %1739 = vst [vmem:[%s1659 + $0x11c] sm:%s1651] %v1738
                %v1740 = vld [vmem:[%s1658 + $0xa0] sm:%s1651]
                %1741 = vst [vmem:[%s1659 + $0x120] sm:%s1651] %v1740
                %v1742 = vld [vmem:[%s1658 + $0xa4] sm:%s1651]
                %1743 = vst [vmem:[%s1659 + $0x124] sm:%s1651] %v1742
                %v1744 = vld [vmem:[%s1658 + $0xa8] sm:%s1651]
                %1745 = vst [vmem:[%s1659 + $0x128] sm:%s1651] %v1744
                %v1746 = vld [vmem:[%s1658 + $0xac] sm:%s1651]
                %1747 = vst [vmem:[%s1659 + $0x12c] sm:%s1651] %v1746
                %v1748 = vld [vmem:[%s1658 + $0xb0] sm:%s1651]
                %1749 = vst [vmem:[%s1659 + $0x130] sm:%s1651] %v1748
                %v1750 = vld [vmem:[%s1658 + $0xb4] sm:%s1651]
                %1751 = vst [vmem:[%s1659 + $0x134] sm:%s1651] %v1750
                %v1752 = vld [vmem:[%s1658 + $0xb8] sm:%s1651]
                %1753 = vst [vmem:[%s1659 + $0x138] sm:%s1651] %v1752
                %v1754 = vld [vmem:[%s1658 + $0xbc] sm:%s1651]
                %1755 = vst [vmem:[%s1659 + $0x13c] sm:%s1651] %v1754
                %v1756 = vld [vmem:[%s1658 + $0xc0] sm:%s1651]
                %1757 = vst [vmem:[%s1659 + $0x180] sm:%s1651] %v1756
                %v1758 = vld [vmem:[%s1658 + $0xc4] sm:%s1651]
                %1759 = vst [vmem:[%s1659 + $0x184] sm:%s1651] %v1758
                %v1760 = vld [vmem:[%s1658 + $0xc8] sm:%s1651]
                %1761 = vst [vmem:[%s1659 + $0x188] sm:%s1651] %v1760
                %v1762 = vld [vmem:[%s1658 + $0xcc] sm:%s1651]
                %1763 = vst [vmem:[%s1659 + $0x18c] sm:%s1651] %v1762
                %v1764 = vld [vmem:[%s1658 + $0xd0] sm:%s1651]
                %1765 = vst [vmem:[%s1659 + $0x190] sm:%s1651] %v1764
                %v1766 = vld [vmem:[%s1658 + $0xd4] sm:%s1651]
                %1767 = vst [vmem:[%s1659 + $0x194] sm:%s1651] %v1766
                %v1768 = vld [vmem:[%s1658 + $0xd8] sm:%s1651]
                %1769 = vst [vmem:[%s1659 + $0x198] sm:%s1651] %v1768
                %v1770 = vld [vmem:[%s1658 + $0xdc] sm:%s1651]
                %1771 = vst [vmem:[%s1659 + $0x19c] sm:%s1651] %v1770
                %v1772 = vld [vmem:[%s1658 + $0xe0] sm:%s1651]
                %1773 = vst [vmem:[%s1659 + $0x1a0] sm:%s1651] %v1772
                %v1774 = vld [vmem:[%s1658 + $0xe4] sm:%s1651]
                %1775 = vst [vmem:[%s1659 + $0x1a4] sm:%s1651] %v1774
                %v1776 = vld [vmem:[%s1658 + $0xe8] sm:%s1651]
                %1777 = vst [vmem:[%s1659 + $0x1a8] sm:%s1651] %v1776
                %v1778 = vld [vmem:[%s1658 + $0xec] sm:%s1651]
                %1779 = vst [vmem:[%s1659 + $0x1ac] sm:%s1651] %v1778
                %v1780 = vld [vmem:[%s1658 + $0xf0] sm:%s1651]
                %1781 = vst [vmem:[%s1659 + $0x1b0] sm:%s1651] %v1780
                %v1782 = vld [vmem:[%s1658 + $0xf4] sm:%s1651]
                %1783 = vst [vmem:[%s1659 + $0x1b4] sm:%s1651] %v1782
                %v1784 = vld [vmem:[%s1658 + $0xf8] sm:%s1651]
                %1785 = vst [vmem:[%s1659 + $0x1b8] sm:%s1651] %v1784
                %v1786 = vld [vmem:[%s1658 + $0xfc] sm:%s1651]
                %1787 = vst [vmem:[%s1659 + $0x1bc] sm:%s1651] %v1786
              $region65: #{tpu_custom_call.1} parent=59 // loop_footer
                %s1657 = sadd.s32 1, %s1653
              $region66: #{tpu_custom_call.1} parent=59 // loop_footer_branch
                %1652 = sbr.rel target = $region62
              $region67: #{tpu_custom_call.1} parent=59 // loop_exit
                _
            $region60: #{tpu_custom_call.1} parent=51 // pred_fallthru
              _
          $region52: #{tpu_custom_call.1} parent=47 // pred_fallthru
            _
          %1936 = vnop
        $region48: #{tpu_custom_call.1} parent=35 // pred_fallthru
          _
        // Predicated region
        $region86: #{tpu_custom_call.1} parent=35 // pred_check
          %p1937 = pneg %p176
        $region87: #{tpu_custom_call.1} parent=35 // pred_check_branch
          %1939 = sbr.rel (%p1937) target = $region89
        $region88: #{tpu_custom_call.1} parent=35 // pred_region
          %s1941 = ssub.s32 1024, 1024
          %1942 = vsyncadd %s1628, %s1941
          %s1943 = smul.addr %s29, 32
          %s1944 = sadd.s32 %s30, %s1943
          %s1945 = smul.addr %s1944, 64
          %s1946 = scalar_lea.hbm %s5, %s1945
          %s1947 = sshll.u32 %s1631, 4
          %s1948 = int_to_ptr.vmem [resolvable:$true] %s1947
          %1953 = dma.vmem_to_hbm [thread:$0]  %s1948, 1024, %s1946, %s1628, 64, 128, 4
        $region89: #{tpu_custom_call.1} parent=35 // pred_fallthru
          _
        // Predicated region
        $region90: #{tpu_custom_call.1} parent=35 // pred_check
          %p1954 = pneg %p204
        $region91: #{tpu_custom_call.1} parent=35 // pred_check_branch
          %1956 = sbr.rel (%p1954) target = $region93
        $region92: #{tpu_custom_call.1} parent=35 // pred_region
          %s1957 = smul.u32 16, %s30
          %s1958 = smul.addr %s29, 128
          %s1959 = sadd.s32 %s1957, %s1958
          %s1960 = smul.addr %s1959, 4
          %s1961 = scalar_lea.vmem %s6, %s1960
          // Predicated region
          $region94: #{tpu_custom_call.1} parent=92 // pred_check
            _
          $region95: #{tpu_custom_call.1} parent=92 // pred_check_branch
            %1963 = sbr.rel (0) target = $region97
          $region96: #{tpu_custom_call.1} parent=92 // pred_region
            // Predicated region
            $region98: #{tpu_custom_call.1} parent=96 // pred_check
              _
            $region99: #{tpu_custom_call.1} parent=96 // pred_check_branch
              %1965 = sbr.rel target = $region101
            $region100: #{tpu_custom_call.1} parent=96 // pred_region
              // Predicated region
              $region113: #{tpu_custom_call.1} parent=100 // pred_check
                _
              $region114: #{tpu_custom_call.1} parent=100 // pred_check_branch
                %2107 = sbr.rel (0) target = $region116
              $region115: #{tpu_custom_call.1} parent=100 // pred_region
                loop: start=0, step=1, limit=1
                $region117: #{tpu_custom_call.1} parent=115 // loop_pre_header
                  _
                $region118: #{tpu_custom_call.1} parent=115 // loop_header
                  %s2109 = sphi 0, %s2113
                  %p2110 = scmp.ge.s32.totalorder %s2109, 1
                  %s2114 = sphi %s1635, %s1635
                  %s2115 = sphi %s1961, %s1961
                $region119: #{tpu_custom_call.1} parent=115 // loop_header_branch
                  %2112 = sbr.rel (%p2110) target = $region123
                $region120: #{tpu_custom_call.1} parent=115 // loop_body
                  _
                $region121: #{tpu_custom_call.1} parent=115 // loop_footer
                  %s2113 = sadd.s32 1, %s2109
                $region122: #{tpu_custom_call.1} parent=115 // loop_footer_branch
                  %2108 = sbr.rel target = $region118
                $region123: #{tpu_custom_call.1} parent=115 // loop_exit
                  _
                %s2117 = ssub.s32 16, 1
                loop: start=0, step=1, limit=1
                $region124: #{tpu_custom_call.1} parent=115 // loop_pre_header
                  _
                $region125: #{tpu_custom_call.1} parent=115 // loop_header
                  %s2119 = sphi 0, %s2123
                  %p2120 = scmp.ge.s32.totalorder %s2119, 1
                  %s2124 = sphi %s1635, %s1635
                  %s2125 = sphi %s1961, %s1961
                $region126: #{tpu_custom_call.1} parent=115 // loop_header_branch
                  %2122 = sbr.rel (%p2120) target = $region130
                $region127: #{tpu_custom_call.1} parent=115 // loop_body
                  %v2126 = vld [vmem:[%s2124] sm:%s2117]
                  %2127 = vst [vmem:[%s2125] sm:%s2117] %v2126
                  %v2128 = vld [vmem:[%s2124 + $0x4] sm:%s2117]
                  %2129 = vst [vmem:[%s2125 + $0x4] sm:%s2117] %v2128
                  %v2130 = vld [vmem:[%s2124 + $0x8] sm:%s2117]
                  %2131 = vst [vmem:[%s2125 + $0x8] sm:%s2117] %v2130
                  %v2132 = vld [vmem:[%s2124 + $0xc] sm:%s2117]
                  %2133 = vst [vmem:[%s2125 + $0xc] sm:%s2117] %v2132
                  %v2134 = vld [vmem:[%s2124 + $0x10] sm:%s2117]
                  %2135 = vst [vmem:[%s2125 + $0x10] sm:%s2117] %v2134
                  %v2136 = vld [vmem:[%s2124 + $0x14] sm:%s2117]
                  %2137 = vst [vmem:[%s2125 + $0x14] sm:%s2117] %v2136
                  %v2138 = vld [vmem:[%s2124 + $0x18] sm:%s2117]
                  %2139 = vst [vmem:[%s2125 + $0x18] sm:%s2117] %v2138
                  %v2140 = vld [vmem:[%s2124 + $0x1c] sm:%s2117]
                  %2141 = vst [vmem:[%s2125 + $0x1c] sm:%s2117] %v2140
                  %v2142 = vld [vmem:[%s2124 + $0x20] sm:%s2117]
                  %2143 = vst [vmem:[%s2125 + $0x20] sm:%s2117] %v2142
                  %v2144 = vld [vmem:[%s2124 + $0x24] sm:%s2117]
                  %2145 = vst [vmem:[%s2125 + $0x24] sm:%s2117] %v2144
                  %v2146 = vld [vmem:[%s2124 + $0x28] sm:%s2117]
                  %2147 = vst [vmem:[%s2125 + $0x28] sm:%s2117] %v2146
                  %v2148 = vld [vmem:[%s2124 + $0x2c] sm:%s2117]
                  %2149 = vst [vmem:[%s2125 + $0x2c] sm:%s2117] %v2148
                  %v2150 = vld [vmem:[%s2124 + $0x30] sm:%s2117]
                  %2151 = vst [vmem:[%s2125 + $0x30] sm:%s2117] %v2150
                  %v2152 = vld [vmem:[%s2124 + $0x34] sm:%s2117]
                  %2153 = vst [vmem:[%s2125 + $0x34] sm:%s2117] %v2152
                  %v2154 = vld [vmem:[%s2124 + $0x38] sm:%s2117]
                  %2155 = vst [vmem:[%s2125 + $0x38] sm:%s2117] %v2154
                  %v2156 = vld [vmem:[%s2124 + $0x3c] sm:%s2117]
                  %2157 = vst [vmem:[%s2125 + $0x3c] sm:%s2117] %v2156
                  %v2158 = vld [vmem:[%s2124 + $0x40] sm:%s2117]
                  %2159 = vst [vmem:[%s2125 + $0x80] sm:%s2117] %v2158
                  %v2160 = vld [vmem:[%s2124 + $0x44] sm:%s2117]
                  %2161 = vst [vmem:[%s2125 + $0x84] sm:%s2117] %v2160
                  %v2162 = vld [vmem:[%s2124 + $0x48] sm:%s2117]
                  %2163 = vst [vmem:[%s2125 + $0x88] sm:%s2117] %v2162
                  %v2164 = vld [vmem:[%s2124 + $0x4c] sm:%s2117]
                  %2165 = vst [vmem:[%s2125 + $0x8c] sm:%s2117] %v2164
                  %v2166 = vld [vmem:[%s2124 + $0x50] sm:%s2117]
                  %2167 = vst [vmem:[%s2125 + $0x90] sm:%s2117] %v2166
                  %v2168 = vld [vmem:[%s2124 + $0x54] sm:%s2117]
                  %2169 = vst [vmem:[%s2125 + $0x94] sm:%s2117] %v2168
                  %v2170 = vld [vmem:[%s2124 + $0x58] sm:%s2117]
                  %2171 = vst [vmem:[%s2125 + $0x98] sm:%s2117] %v2170
                  %v2172 = vld [vmem:[%s2124 + $0x5c] sm:%s2117]
                  %2173 = vst [vmem:[%s2125 + $0x9c] sm:%s2117] %v2172
                  %v2174 = vld [vmem:[%s2124 + $0x60] sm:%s2117]
                  %2175 = vst [vmem:[%s2125 + $0xa0] sm:%s2117] %v2174
                  %v2176 = vld [vmem:[%s2124 + $0x64] sm:%s2117]
                  %2177 = vst [vmem:[%s2125 + $0xa4] sm:%s2117] %v2176
                  %v2178 = vld [vmem:[%s2124 + $0x68] sm:%s2117]
                  %2179 = vst [vmem:[%s2125 + $0xa8] sm:%s2117] %v2178
                  %v2180 = vld [vmem:[%s2124 + $0x6c] sm:%s2117]
                  %2181 = vst [vmem:[%s2125 + $0xac] sm:%s2117] %v2180
                  %v2182 = vld [vmem:[%s2124 + $0x70] sm:%s2117]
                  %2183 = vst [vmem:[%s2125 + $0xb0] sm:%s2117] %v2182
                  %v2184 = vld [vmem:[%s2124 + $0x74] sm:%s2117]
                  %2185 = vst [vmem:[%s2125 + $0xb4] sm:%s2117] %v2184
                  %v2186 = vld [vmem:[%s2124 + $0x78] sm:%s2117]
                  %2187 = vst [vmem:[%s2125 + $0xb8] sm:%s2117] %v2186
                  %v2188 = vld [vmem:[%s2124 + $0x7c] sm:%s2117]
                  %2189 = vst [vmem:[%s2125 + $0xbc] sm:%s2117] %v2188
                  %v2190 = vld [vmem:[%s2124 + $0x80] sm:%s2117]
                  %2191 = vst [vmem:[%s2125 + $0x100] sm:%s2117] %v2190
                  %v2192 = vld [vmem:[%s2124 + $0x84] sm:%s2117]
                  %2193 = vst [vmem:[%s2125 + $0x104] sm:%s2117] %v2192
                  %v2194 = vld [vmem:[%s2124 + $0x88] sm:%s2117]
                  %2195 = vst [vmem:[%s2125 + $0x108] sm:%s2117] %v2194
                  %v2196 = vld [vmem:[%s2124 + $0x8c] sm:%s2117]
                  %2197 = vst [vmem:[%s2125 + $0x10c] sm:%s2117] %v2196
                  %v2198 = vld [vmem:[%s2124 + $0x90] sm:%s2117]
                  %2199 = vst [vmem:[%s2125 + $0x110] sm:%s2117] %v2198
                  %v2200 = vld [vmem:[%s2124 + $0x94] sm:%s2117]
                  %2201 = vst [vmem:[%s2125 + $0x114] sm:%s2117] %v2200
                  %v2202 = vld [vmem:[%s2124 + $0x98] sm:%s2117]
                  %2203 = vst [vmem:[%s2125 + $0x118] sm:%s2117] %v2202
                  %v2204 = vld [vmem:[%s2124 + $0x9c] sm:%s2117]
                  %2205 = vst [vmem:[%s2125 + $0x11c] sm:%s2117] %v2204
                  %v2206 = vld [vmem:[%s2124 + $0xa0] sm:%s2117]
                  %2207 = vst [vmem:[%s2125 + $0x120] sm:%s2117] %v2206
                  %v2208 = vld [vmem:[%s2124 + $0xa4] sm:%s2117]
                  %2209 = vst [vmem:[%s2125 + $0x124] sm:%s2117] %v2208
                  %v2210 = vld [vmem:[%s2124 + $0xa8] sm:%s2117]
                  %2211 = vst [vmem:[%s2125 + $0x128] sm:%s2117] %v2210
                  %v2212 = vld [vmem:[%s2124 + $0xac] sm:%s2117]
                  %2213 = vst [vmem:[%s2125 + $0x12c] sm:%s2117] %v2212
                  %v2214 = vld [vmem:[%s2124 + $0xb0] sm:%s2117]
                  %2215 = vst [vmem:[%s2125 + $0x130] sm:%s2117] %v2214
                  %v2216 = vld [vmem:[%s2124 + $0xb4] sm:%s2117]
                  %2217 = vst [vmem:[%s2125 + $0x134] sm:%s2117] %v2216
                  %v2218 = vld [vmem:[%s2124 + $0xb8] sm:%s2117]
                  %2219 = vst [vmem:[%s2125 + $0x138] sm:%s2117] %v2218
                  %v2220 = vld [vmem:[%s2124 + $0xbc] sm:%s2117]
                  %2221 = vst [vmem:[%s2125 + $0x13c] sm:%s2117] %v2220
                  %v2222 = vld [vmem:[%s2124 + $0xc0] sm:%s2117]
                  %2223 = vst [vmem:[%s2125 + $0x180] sm:%s2117] %v2222
                  %v2224 = vld [vmem:[%s2124 + $0xc4] sm:%s2117]
                  %2225 = vst [vmem:[%s2125 + $0x184] sm:%s2117] %v2224
                  %v2226 = vld [vmem:[%s2124 + $0xc8] sm:%s2117]
                  %2227 = vst [vmem:[%s2125 + $0x188] sm:%s2117] %v2226
                  %v2228 = vld [vmem:[%s2124 + $0xcc] sm:%s2117]
                  %2229 = vst [vmem:[%s2125 + $0x18c] sm:%s2117] %v2228
                  %v2230 = vld [vmem:[%s2124 + $0xd0] sm:%s2117]
                  %2231 = vst [vmem:[%s2125 + $0x190] sm:%s2117] %v2230
                  %v2232 = vld [vmem:[%s2124 + $0xd4] sm:%s2117]
                  %2233 = vst [vmem:[%s2125 + $0x194] sm:%s2117] %v2232
                  %v2234 = vld [vmem:[%s2124 + $0xd8] sm:%s2117]
                  %2235 = vst [vmem:[%s2125 + $0x198] sm:%s2117] %v2234
                  %v2236 = vld [vmem:[%s2124 + $0xdc] sm:%s2117]
                  %2237 = vst [vmem:[%s2125 + $0x19c] sm:%s2117] %v2236
                  %v2238 = vld [vmem:[%s2124 + $0xe0] sm:%s2117]
                  %2239 = vst [vmem:[%s2125 + $0x1a0] sm:%s2117] %v2238
                  %v2240 = vld [vmem:[%s2124 + $0xe4] sm:%s2117]
                  %2241 = vst [vmem:[%s2125 + $0x1a4] sm:%s2117] %v2240
                  %v2242 = vld [vmem:[%s2124 + $0xe8] sm:%s2117]
                  %2243 = vst [vmem:[%s2125 + $0x1a8] sm:%s2117] %v2242
                  %v2244 = vld [vmem:[%s2124 + $0xec] sm:%s2117]
                  %2245 = vst [vmem:[%s2125 + $0x1ac] sm:%s2117] %v2244
                  %v2246 = vld [vmem:[%s2124 + $0xf0] sm:%s2117]
                  %2247 = vst [vmem:[%s2125 + $0x1b0] sm:%s2117] %v2246
                  %v2248 = vld [vmem:[%s2124 + $0xf4] sm:%s2117]
                  %2249 = vst [vmem:[%s2125 + $0x1b4] sm:%s2117] %v2248
                  %v2250 = vld [vmem:[%s2124 + $0xf8] sm:%s2117]
                  %2251 = vst [vmem:[%s2125 + $0x1b8] sm:%s2117] %v2250
                  %v2252 = vld [vmem:[%s2124 + $0xfc] sm:%s2117]
                  %2253 = vst [vmem:[%s2125 + $0x1bc] sm:%s2117] %v2252
                $region128: #{tpu_custom_call.1} parent=115 // loop_footer
                  %s2123 = sadd.s32 1, %s2119
                $region129: #{tpu_custom_call.1} parent=115 // loop_footer_branch
                  %2118 = sbr.rel target = $region125
                $region130: #{tpu_custom_call.1} parent=115 // loop_exit
                  _
              $region116: #{tpu_custom_call.1} parent=100 // pred_fallthru
                _
            $region101: #{tpu_custom_call.1} parent=96 // pred_fallthru
              _
            // Predicated region
            $region102: #{tpu_custom_call.1} parent=96 // pred_check
              _
            $region103: #{tpu_custom_call.1} parent=96 // pred_check_branch
              %1967 = sbr.rel (0) target = $region105
            $region104: #{tpu_custom_call.1} parent=96 // pred_region
              %s1969 = ssub.s32 16, 1
              loop: start=0, step=1, limit=1
              $region106: #{tpu_custom_call.1} parent=104 // loop_pre_header
                _
              $region107: #{tpu_custom_call.1} parent=104 // loop_header
                %s1971 = sphi 0, %s1975
                %p1972 = scmp.ge.s32.totalorder %s1971, 1
                %s1976 = sphi %s1635, %s1635
                %s1977 = sphi %s1961, %s1961
              $region108: #{tpu_custom_call.1} parent=104 // loop_header_branch
                %1974 = sbr.rel (%p1972) target = $region112
              $region109: #{tpu_custom_call.1} parent=104 // loop_body
                %v1978 = vld [vmem:[%s1976] sm:%s1969]
                %1979 = vst [vmem:[%s1977] sm:%s1969] %v1978
                %v1980 = vld [vmem:[%s1976 + $0x4] sm:%s1969]
                %1981 = vst [vmem:[%s1977 + $0x4] sm:%s1969] %v1980
                %v1982 = vld [vmem:[%s1976 + $0x8] sm:%s1969]
                %1983 = vst [vmem:[%s1977 + $0x8] sm:%s1969] %v1982
                %v1984 = vld [vmem:[%s1976 + $0xc] sm:%s1969]
                %1985 = vst [vmem:[%s1977 + $0xc] sm:%s1969] %v1984
                %v1986 = vld [vmem:[%s1976 + $0x10] sm:%s1969]
                %1987 = vst [vmem:[%s1977 + $0x10] sm:%s1969] %v1986
                %v1988 = vld [vmem:[%s1976 + $0x14] sm:%s1969]
                %1989 = vst [vmem:[%s1977 + $0x14] sm:%s1969] %v1988
                %v1990 = vld [vmem:[%s1976 + $0x18] sm:%s1969]
                %1991 = vst [vmem:[%s1977 + $0x18] sm:%s1969] %v1990
                %v1992 = vld [vmem:[%s1976 + $0x1c] sm:%s1969]
                %1993 = vst [vmem:[%s1977 + $0x1c] sm:%s1969] %v1992
                %v1994 = vld [vmem:[%s1976 + $0x20] sm:%s1969]
                %1995 = vst [vmem:[%s1977 + $0x20] sm:%s1969] %v1994
                %v1996 = vld [vmem:[%s1976 + $0x24] sm:%s1969]
                %1997 = vst [vmem:[%s1977 + $0x24] sm:%s1969] %v1996
                %v1998 = vld [vmem:[%s1976 + $0x28] sm:%s1969]
                %1999 = vst [vmem:[%s1977 + $0x28] sm:%s1969] %v1998
                %v2000 = vld [vmem:[%s1976 + $0x2c] sm:%s1969]
                %2001 = vst [vmem:[%s1977 + $0x2c] sm:%s1969] %v2000
                %v2002 = vld [vmem:[%s1976 + $0x30] sm:%s1969]
                %2003 = vst [vmem:[%s1977 + $0x30] sm:%s1969] %v2002
                %v2004 = vld [vmem:[%s1976 + $0x34] sm:%s1969]
                %2005 = vst [vmem:[%s1977 + $0x34] sm:%s1969] %v2004
                %v2006 = vld [vmem:[%s1976 + $0x38] sm:%s1969]
                %2007 = vst [vmem:[%s1977 + $0x38] sm:%s1969] %v2006
                %v2008 = vld [vmem:[%s1976 + $0x3c] sm:%s1969]
                %2009 = vst [vmem:[%s1977 + $0x3c] sm:%s1969] %v2008
                %v2010 = vld [vmem:[%s1976 + $0x40] sm:%s1969]
                %2011 = vst [vmem:[%s1977 + $0x80] sm:%s1969] %v2010
                %v2012 = vld [vmem:[%s1976 + $0x44] sm:%s1969]
                %2013 = vst [vmem:[%s1977 + $0x84] sm:%s1969] %v2012
                %v2014 = vld [vmem:[%s1976 + $0x48] sm:%s1969]
                %2015 = vst [vmem:[%s1977 + $0x88] sm:%s1969] %v2014
                %v2016 = vld [vmem:[%s1976 + $0x4c] sm:%s1969]
                %2017 = vst [vmem:[%s1977 + $0x8c] sm:%s1969] %v2016
                %v2018 = vld [vmem:[%s1976 + $0x50] sm:%s1969]
                %2019 = vst [vmem:[%s1977 + $0x90] sm:%s1969] %v2018
                %v2020 = vld [vmem:[%s1976 + $0x54] sm:%s1969]
                %2021 = vst [vmem:[%s1977 + $0x94] sm:%s1969] %v2020
                %v2022 = vld [vmem:[%s1976 + $0x58] sm:%s1969]
                %2023 = vst [vmem:[%s1977 + $0x98] sm:%s1969] %v2022
                %v2024 = vld [vmem:[%s1976 + $0x5c] sm:%s1969]
                %2025 = vst [vmem:[%s1977 + $0x9c] sm:%s1969] %v2024
                %v2026 = vld [vmem:[%s1976 + $0x60] sm:%s1969]
                %2027 = vst [vmem:[%s1977 + $0xa0] sm:%s1969] %v2026
                %v2028 = vld [vmem:[%s1976 + $0x64] sm:%s1969]
                %2029 = vst [vmem:[%s1977 + $0xa4] sm:%s1969] %v2028
                %v2030 = vld [vmem:[%s1976 + $0x68] sm:%s1969]
                %2031 = vst [vmem:[%s1977 + $0xa8] sm:%s1969] %v2030
                %v2032 = vld [vmem:[%s1976 + $0x6c] sm:%s1969]
                %2033 = vst [vmem:[%s1977 + $0xac] sm:%s1969] %v2032
                %v2034 = vld [vmem:[%s1976 + $0x70] sm:%s1969]
                %2035 = vst [vmem:[%s1977 + $0xb0] sm:%s1969] %v2034
                %v2036 = vld [vmem:[%s1976 + $0x74] sm:%s1969]
                %2037 = vst [vmem:[%s1977 + $0xb4] sm:%s1969] %v2036
                %v2038 = vld [vmem:[%s1976 + $0x78] sm:%s1969]
                %2039 = vst [vmem:[%s1977 + $0xb8] sm:%s1969] %v2038
                %v2040 = vld [vmem:[%s1976 + $0x7c] sm:%s1969]
                %2041 = vst [vmem:[%s1977 + $0xbc] sm:%s1969] %v2040
                %v2042 = vld [vmem:[%s1976 + $0x80] sm:%s1969]
                %2043 = vst [vmem:[%s1977 + $0x100] sm:%s1969] %v2042
                %v2044 = vld [vmem:[%s1976 + $0x84] sm:%s1969]
                %2045 = vst [vmem:[%s1977 + $0x104] sm:%s1969] %v2044
                %v2046 = vld [vmem:[%s1976 + $0x88] sm:%s1969]
                %2047 = vst [vmem:[%s1977 + $0x108] sm:%s1969] %v2046
                %v2048 = vld [vmem:[%s1976 + $0x8c] sm:%s1969]
                %2049 = vst [vmem:[%s1977 + $0x10c] sm:%s1969] %v2048
                %v2050 = vld [vmem:[%s1976 + $0x90] sm:%s1969]
                %2051 = vst [vmem:[%s1977 + $0x110] sm:%s1969] %v2050
                %v2052 = vld [vmem:[%s1976 + $0x94] sm:%s1969]
                %2053 = vst [vmem:[%s1977 + $0x114] sm:%s1969] %v2052
                %v2054 = vld [vmem:[%s1976 + $0x98] sm:%s1969]
                %2055 = vst [vmem:[%s1977 + $0x118] sm:%s1969] %v2054
                %v2056 = vld [vmem:[%s1976 + $0x9c] sm:%s1969]
                %2057 = vst [vmem:[%s1977 + $0x11c] sm:%s1969] %v2056
                %v2058 = vld [vmem:[%s1976 + $0xa0] sm:%s1969]
                %2059 = vst [vmem:[%s1977 + $0x120] sm:%s1969] %v2058
                %v2060 = vld [vmem:[%s1976 + $0xa4] sm:%s1969]
                %2061 = vst [vmem:[%s1977 + $0x124] sm:%s1969] %v2060
                %v2062 = vld [vmem:[%s1976 + $0xa8] sm:%s1969]
                %2063 = vst [vmem:[%s1977 + $0x128] sm:%s1969] %v2062
                %v2064 = vld [vmem:[%s1976 + $0xac] sm:%s1969]
                %2065 = vst [vmem:[%s1977 + $0x12c] sm:%s1969] %v2064
                %v2066 = vld [vmem:[%s1976 + $0xb0] sm:%s1969]
                %2067 = vst [vmem:[%s1977 + $0x130] sm:%s1969] %v2066
                %v2068 = vld [vmem:[%s1976 + $0xb4] sm:%s1969]
                %2069 = vst [vmem:[%s1977 + $0x134] sm:%s1969] %v2068
                %v2070 = vld [vmem:[%s1976 + $0xb8] sm:%s1969]
                %2071 = vst [vmem:[%s1977 + $0x138] sm:%s1969] %v2070
                %v2072 = vld [vmem:[%s1976 + $0xbc] sm:%s1969]
                %2073 = vst [vmem:[%s1977 + $0x13c] sm:%s1969] %v2072
                %v2074 = vld [vmem:[%s1976 + $0xc0] sm:%s1969]
                %2075 = vst [vmem:[%s1977 + $0x180] sm:%s1969] %v2074
                %v2076 = vld [vmem:[%s1976 + $0xc4] sm:%s1969]
                %2077 = vst [vmem:[%s1977 + $0x184] sm:%s1969] %v2076
                %v2078 = vld [vmem:[%s1976 + $0xc8] sm:%s1969]
                %2079 = vst [vmem:[%s1977 + $0x188] sm:%s1969] %v2078
                %v2080 = vld [vmem:[%s1976 + $0xcc] sm:%s1969]
                %2081 = vst [vmem:[%s1977 + $0x18c] sm:%s1969] %v2080
                %v2082 = vld [vmem:[%s1976 + $0xd0] sm:%s1969]
                %2083 = vst [vmem:[%s1977 + $0x190] sm:%s1969] %v2082
                %v2084 = vld [vmem:[%s1976 + $0xd4] sm:%s1969]
                %2085 = vst [vmem:[%s1977 + $0x194] sm:%s1969] %v2084
                %v2086 = vld [vmem:[%s1976 + $0xd8] sm:%s1969]
                %2087 = vst [vmem:[%s1977 + $0x198] sm:%s1969] %v2086
                %v2088 = vld [vmem:[%s1976 + $0xdc] sm:%s1969]
                %2089 = vst [vmem:[%s1977 + $0x19c] sm:%s1969] %v2088
                %v2090 = vld [vmem:[%s1976 + $0xe0] sm:%s1969]
                %2091 = vst [vmem:[%s1977 + $0x1a0] sm:%s1969] %v2090
                %v2092 = vld [vmem:[%s1976 + $0xe4] sm:%s1969]
                %2093 = vst [vmem:[%s1977 + $0x1a4] sm:%s1969] %v2092
                %v2094 = vld [vmem:[%s1976 + $0xe8] sm:%s1969]
                %2095 = vst [vmem:[%s1977 + $0x1a8] sm:%s1969] %v2094
                %v2096 = vld [vmem:[%s1976 + $0xec] sm:%s1969]
                %2097 = vst [vmem:[%s1977 + $0x1ac] sm:%s1969] %v2096
                %v2098 = vld [vmem:[%s1976 + $0xf0] sm:%s1969]
                %2099 = vst [vmem:[%s1977 + $0x1b0] sm:%s1969] %v2098
                %v2100 = vld [vmem:[%s1976 + $0xf4] sm:%s1969]
                %2101 = vst [vmem:[%s1977 + $0x1b4] sm:%s1969] %v2100
                %v2102 = vld [vmem:[%s1976 + $0xf8] sm:%s1969]
                %2103 = vst [vmem:[%s1977 + $0x1b8] sm:%s1969] %v2102
                %v2104 = vld [vmem:[%s1976 + $0xfc] sm:%s1969]
                %2105 = vst [vmem:[%s1977 + $0x1bc] sm:%s1969] %v2104
              $region110: #{tpu_custom_call.1} parent=104 // loop_footer
                %s1975 = sadd.s32 1, %s1971
              $region111: #{tpu_custom_call.1} parent=104 // loop_footer_branch
                %1970 = sbr.rel target = $region107
              $region112: #{tpu_custom_call.1} parent=104 // loop_exit
                _
            $region105: #{tpu_custom_call.1} parent=96 // pred_fallthru
              _
          $region97: #{tpu_custom_call.1} parent=92 // pred_fallthru
            _
          %2254 = vnop
        $region93: #{tpu_custom_call.1} parent=35 // pred_fallthru
          _
      $region36: #{tpu_custom_call.1} parent=5 // pred_fallthru
        _
      %p2255 = scmp.le.s32.totalorder 2, %s20
      // Predicated region
      $region131: #{tpu_custom_call.1} parent=5 // pred_check
        %p2256 = pneg %p2255
      $region132: #{tpu_custom_call.1} parent=5 // pred_check_branch
        %2258 = sbr.rel (%p2256) target = $region134
      $region133: #{tpu_custom_call.1} parent=5 // pred_region
        %s2259 = ssub.s32 %s20, 2
        // Predicated region
        $region135: #{tpu_custom_call.1} parent=133 // pred_check
          %p2260 = pneg %p154
        $region136: #{tpu_custom_call.1} parent=133 // pred_check_branch
          %2262 = sbr.rel (%p2260) target = $region138
        $region137: #{tpu_custom_call.1} parent=133 // pred_region
          %s2263 = sand.u32 %s139, 1
          %s2264 = sand.u32 %s139, 1
          %s2265 = smul.addr %s2264, 256
          %s2266 = scalar_lea.vmem [#allocation7], %s2265
        $region138: #{tpu_custom_call.1} parent=133 // pred_fallthru
          _
        // Predicated region
        $region139: #{tpu_custom_call.1} parent=133 // pred_check
          %p2267 = pneg %p182
        $region140: #{tpu_custom_call.1} parent=133 // pred_check_branch
          %2269 = sbr.rel (%p2267) target = $region142
        $region141: #{tpu_custom_call.1} parent=133 // pred_region
          %s2270 = sand.u32 %s167, 1
          %s2271 = scalar_lea.sflag [#allocation4], %s2270
          %s2272 = sand.u32 %s167, 1
          %s2273 = smul.addr %s2272, 64
          %s2274 = scalar_lea.vmem [#allocation8], %s2273
          %2275 = dma.done %s2271, 1024
        $region142: #{tpu_custom_call.1} parent=133 // pred_fallthru
          _
        // Predicated region
        $region143: #{tpu_custom_call.1} parent=133 // pred_check
          %p2276 = pneg %p210
        $region144: #{tpu_custom_call.1} parent=133 // pred_check_branch
          %2278 = sbr.rel (%p2276) target = $region146
        $region145: #{tpu_custom_call.1} parent=133 // pred_region
          %s2279 = sand.u32 %s195, 1
          %s2280 = sand.u32 %s195, 1
          %s2281 = smul.addr %s2280, 256
          %s2282 = scalar_lea.vmem [#allocation9], %s2281
        $region146: #{tpu_custom_call.1} parent=133 // pred_fallthru
          _
      $region134: #{tpu_custom_call.1} parent=5 // pred_fallthru
        _
    $region6: #{tpu_custom_call.1} parent=1 // loop_footer
      %s24 = sadd.s32 1, %s20
    $region7: #{tpu_custom_call.1} parent=1 // loop_footer_branch
      %19 = sbr.rel target = $region3
    $region8: #{tpu_custom_call.1} parent=1 // loop_exit
      _
    %2283 = vsyncpa [#allocation3], 1
    %s2284 = scalar_lea.sflag [#allocation3], 1
    %2285 = vsyncpa %s2284, 1
    %2286 = vsyncpa [#allocation6], 1
    %2287 = vsyncpa [#allocation4], 1
    %s2288 = scalar_lea.sflag [#allocation4], 1
    %2289 = vsyncpa %s2288, 1

</llo_original>
